<compile_context>
chip_gen: v7x
topology: tpu7x:2x2x1
jax: 0.10.0
libtpu: 0.0.40
codegen_flags: <defaults>
</compile_context>

<pallas_src>
import functools

import jax
import jax.numpy as jnp
import numpy as np
from jax.experimental import pallas as pl
from jax.experimental.pallas import tpu as pltpu


def _mha_kernel(q_ref, k_ref, v_ref, mask_ref,
                wq_ref, wk_ref, wv_ref, wo_ref,
                o_ref, lq_ref, acc_ref, *, scale, h, dk, dv):
    """Grid = (L blocks [parallel], S blocks [arbitrary / reduction]).

    Scratch:
      lq_ref  (N, TL, h*dk) bf16 : fused, pre-scaled Q projection (per L block)
      acc_ref (N, TL, h*dv) f32  : concatenated head outputs, summed over S
    The Wo GEMM + output store happen once per L block (at the last S step),
    so the only HBM output traffic is a single lane-dense (N, TL, Dv) store.
    """
    s_idx = pl.program_id(1)
    n_s = pl.num_programs(1)

    n, tl, Dk = q_ref.shape
    _, ts, Dv_in = v_ref.shape
    Dv = o_ref.shape[-1]

    # ---- once per L block: fused Q projection (all heads) + acc init -------
    @pl.when(s_idx == 0)
    def _():
        q = q_ref[...].reshape(n * tl, Dk).astype(jnp.bfloat16)
        lq = jnp.dot(q, wq_ref[...], preferred_element_type=jnp.float32)
        # Fold the 1/sqrt(dk) scale into lq once (cheaper than scaling scores).
        lq_ref[...] = (lq * scale).astype(jnp.bfloat16).reshape(n, tl, h * dk)
        acc_ref[...] = jnp.zeros_like(acc_ref)

    # ---- fused K / V projections for this S block (all heads at once) ------
    kf = k_ref[...].reshape(n * ts, Dk).astype(jnp.bfloat16)
    vf = v_ref[...].reshape(n * ts, Dv_in).astype(jnp.bfloat16)
    lk = jnp.dot(kf, wk_ref[...], preferred_element_type=jnp.float32)
    lv = jnp.dot(vf, wv_ref[...], preferred_element_type=jnp.float32)
    lk = lk.astype(jnp.bfloat16).reshape(n, ts, h * dk)
    lv = lv.astype(jnp.bfloat16).reshape(n, ts, h * dv)

    mask = mask_ref[...]          # (TL, TS) f32
    lq_all = lq_ref[...]          # (N, TL, h*dk) bf16, already scaled

    heads = []
    for hh in range(h):           # h is small & static -> unrolled
        lq_h = lq_all[:, :, hh * dk:(hh + 1) * dk]
        lk_h = lk[:, :, hh * dk:(hh + 1) * dk]
        lv_h = lv[:, :, hh * dv:(hh + 1) * dv]

        # bf16 operands, f32 accumulation on the MXU.
        dot = jnp.einsum('nle,nse->nls', lq_h, lk_h,
                         preferred_element_type=jnp.float32)
        dot = dot + mask[None, :, :]

        # Legacy F.softmax implicit dim=0 (batch axis), kept in f32 on VPU/EUP.
        m = jnp.max(dot, axis=0, keepdims=True)
        e = jnp.exp(dot - m)
        p = e * pl.reciprocal(jnp.sum(e, axis=0, keepdims=True), approx=True)

        heads.append(jnp.einsum('nls,nse->nle', p.astype(jnp.bfloat16), lv_h,
                                preferred_element_type=jnp.float32))

    acc_ref[...] += jnp.concatenate(heads, axis=-1)   # (N, TL, h*dv) f32

    # ---- once per L block: single fused output projection + store ----------
    @pl.when(s_idx == n_s - 1)
    def _():
        hd = acc_ref[...].astype(jnp.bfloat16).reshape(n * tl, h * dv)
        out = jnp.dot(hd, wo_ref[...], preferred_element_type=jnp.float32)
        o_ref[...] = out.reshape(n, tl, Dv).astype(o_ref.dtype)


def multi_head_attention(Q, K, V, Wq, Wk, Wv, Wo_t, mask=None, *,
                         l_block=128, s_block=512):
    """Wq/Wk: (h, Dk, dk), Wv: (h, Dv, dv), Wo_t: (h, dv, Dv) = Lo.weight.T per
    head. Returns (N, L, Dv) float32."""
    N, L, Dk = Q.shape
    _, S, Dv = V.shape
    h, _, dk = Wq.shape
    dv = Wv.shape[-1]

    # Tile sizes: full dim when small (satisfies the (8,128) rule via the
    # "equals full dim" escape); otherwise aligned blocks sized for a <=48 MiB
    # VMEM budget so the same config survives v7x's 64 MiB VMEM.
    TL = L if L <= l_block else l_block
    TS = S if S <= s_block else s_block
    if TL != L:
        assert L % TL == 0 and TL % 8 == 0
    if TS != S:
        assert S % TS == 0 and TS % 128 == 0

    if mask is None:
        mask = jnp.zeros((L, S), jnp.float32)
    mask = mask.astype(jnp.float32)

    # Host-side weight prep: fuse all heads into single wide bf16 GEMM operands
    # (layout matches torch.cat([head_0, ..., head_{h-1}], dim=-1)).
    WQ = jnp.transpose(Wq, (1, 0, 2)).reshape(Dk, h * dk).astype(jnp.bfloat16)
    WK = jnp.transpose(Wk, (1, 0, 2)).reshape(Dk, h * dk).astype(jnp.bfloat16)
    WV = jnp.transpose(Wv, (1, 0, 2)).reshape(Dv, h * dv).astype(jnp.bfloat16)
    WO = Wo_t.reshape(h * dv, Dv).astype(jnp.bfloat16)

    scale = 1.0 / (dk ** 0.5)
    grid = (L // TL, S // TS)

    flops = int(2 * N * L * Dk * h * dk + 2 * N * S * Dk * h * dk
                + 2 * N * S * Dv * h * dv + 2 * N * L * S * h * (dk + dv)
                + 2 * N * L * h * dv * Dv)
    transcendentals = int(N * L * S * h)
    bytes_accessed = int(4 * (Q.size + K.size + V.size + N * L * Dv + mask.size)
                         + 2 * (WQ.size + WK.size + WV.size + WO.size))

    kernel = functools.partial(_mha_kernel, scale=scale, h=h, dk=dk, dv=dv)

    return pl.pallas_call(
        kernel,
        out_shape=jax.ShapeDtypeStruct((N, L, Dv), jnp.float32),
        grid_spec=pltpu.PrefetchScalarGridSpec(
            num_scalar_prefetch=0,
            grid=grid,
            in_specs=[
                pl.BlockSpec((N, TL, Dk), lambda l, s: (0, l, 0)),    # Q
                pl.BlockSpec((N, TS, Dk), lambda l, s: (0, s, 0)),    # K
                pl.BlockSpec((N, TS, Dv), lambda l, s: (0, s, 0)),    # V
                pl.BlockSpec((TL, TS),    lambda l, s: (l, s)),       # mask
                pl.BlockSpec((Dk, h * dk), lambda l, s: (0, 0)),      # WQ (fused)
                pl.BlockSpec((Dk, h * dk), lambda l, s: (0, 0)),      # WK (fused)
                pl.BlockSpec((Dv, h * dv), lambda l, s: (0, 0)),      # WV (fused)
                pl.BlockSpec((h * dv, Dv), lambda l, s: (0, 0)),      # WO (fused)
            ],
            out_specs=pl.BlockSpec((N, TL, Dv), lambda l, s: (0, l, 0)),
            scratch_shapes=[
                pltpu.VMEM((N, TL, h * dk), jnp.bfloat16),   # lq (scaled)
                pltpu.VMEM((N, TL, h * dv), jnp.float32),    # head accumulator
            ],
        ),
        compiler_params=pltpu.CompilerParams(
            dimension_semantics=("parallel", "arbitrary"),
            vmem_limit_bytes=48 * 1024 * 1024,
        ),
        cost_estimate=pl.CostEstimate(
            flops=flops, transcendentals=transcendentals,
            bytes_accessed=bytes_accessed),
    )(Q, K, V, mask, WQ, WK, WV, WO)


def _reference(Q, K, V, Wq, Wk, Wv, Wo_t, mask=None):
    """Pure-JAX f32 replica of the PyTorch forward (incl. legacy softmax dim=0)."""
    h, _, dk = Wq.shape
    dv = Wv.shape[-1]
    heads = []
    for i in range(h):
        lq = Q @ Wq[i]
        lk = K @ Wk[i]
        lv = V @ Wv[i]
        dot = jnp.einsum('nle,nse->nls', lq, lk) / dk ** 0.5
        if mask is not None:
            dot = dot + mask
        p = jax.nn.softmax(dot, axis=0)  # legacy implicit dim=0 for 3-D input
        heads.append(jnp.einsum('nls,nse->nle', p, lv))
    heads = jnp.concatenate(heads, axis=-1)          # (N, L, h*dv)
    return heads @ Wo_t.reshape(h * dv, -1)          # (N, L, Dv)


if __name__ == "__main__":
    key = jax.random.PRNGKey(0)
    N, L, S = 2, 8, 8
    h, Dk, Dv, dk, dv = 4, 32, 32, 16, 16

    ks = jax.random.split(key, 8)
    Q = jax.random.normal(ks[0], (N, L, Dk), jnp.float32)
    K = jax.random.normal(ks[1], (N, S, Dk), jnp.float32)
    V = jax.random.normal(ks[2], (N, S, Dv), jnp.float32)
    # Deterministic synthetic parameters (module __init__ shapes, bias=False).
    Wq = jax.random.normal(ks[3], (h, Dk, dk), jnp.float32) * 0.1    # Lq[i].weight.T
    Wk = jax.random.normal(ks[4], (h, Dk, dk), jnp.float32) * 0.1    # Lk[i].weight.T
    Wv = jax.random.normal(ks[5], (h, Dv, dv), jnp.float32) * 0.1    # Lv[i].weight.T
    Wo_t = jax.random.normal(ks[6], (h, dv, Dv), jnp.float32) * 0.1  # Lo.weight.T per head
    mask = 0.5 * jax.random.normal(ks[7], (L, S), jnp.float32)

    # No-mask path.
    out = jax.block_until_ready(multi_head_attention(Q, K, V, Wq, Wk, Wv, Wo_t))
    ref = _reference(Q, K, V, Wq, Wk, Wv, Wo_t)
    assert out.shape == (N, L, Dv)
    np.testing.assert_allclose(np.asarray(out), np.asarray(ref),
                               rtol=2e-2, atol=2e-2)

    # Masked path.
    out_m = jax.block_until_ready(
        multi_head_attention(Q, K, V, Wq, Wk, Wv, Wo_t, mask))
    ref_m = _reference(Q, K, V, Wq, Wk, Wv, Wo_t, mask)
    np.testing.assert_allclose(np.asarray(out_m), np.asarray(ref_m),
                               rtol=2e-2, atol=2e-2)

    print("KERNEL_OK")
</pallas_src>

<mosaic_0001>
module attributes {stable_mosaic.version = 11 : i64} {
  func.func @_mha_kernel(%arg0: i32, %arg1: i32, %arg2: memref<2x8x32xf32, #tpu.memory_space<vmem>>, %arg3: memref<2x8x32xf32, #tpu.memory_space<vmem>>, %arg4: memref<2x8x32xf32, #tpu.memory_space<vmem>>, %arg5: memref<8x8xf32, #tpu.memory_space<vmem>>, %arg6: memref<32x64xbf16, #tpu.memory_space<vmem>>, %arg7: memref<32x64xbf16, #tpu.memory_space<vmem>>, %arg8: memref<32x64xbf16, #tpu.memory_space<vmem>>, %arg9: memref<64x32xbf16, #tpu.memory_space<vmem>>, %arg10: memref<2x8x32xf32, #tpu.memory_space<vmem>>, %arg11: memref<2x8x64xbf16, #tpu.memory_space<vmem>>, %arg12: memref<2x8x64xf32, #tpu.memory_space<vmem>>) attributes {dimension_semantics = [#tpu.dimension_semantics<parallel>, #tpu.dimension_semantics<arbitrary>], iteration_bounds = array<i64: 1, 1>, scalar_prefetch = 0 : i64, scratch_operands = 2 : i64, tpu.core_type = #tpu.core_type<tc>, window_params = [{transform_indices = @transform_0, window_bounds = array<i64: 2, 8, 32>}, {transform_indices = @transform_1, window_bounds = array<i64: 2, 8, 32>}, {transform_indices = @transform_2, window_bounds = array<i64: 2, 8, 32>}, {transform_indices = @transform_3, window_bounds = array<i64: 8, 8>}, {pipeline_mode = #tpu.pipeline_mode<synchronous>, transform_indices = @transform_4, window_bounds = array<i64: 32, 64>}, {pipeline_mode = #tpu.pipeline_mode<synchronous>, transform_indices = @transform_5, window_bounds = array<i64: 32, 64>}, {pipeline_mode = #tpu.pipeline_mode<synchronous>, transform_indices = @transform_6, window_bounds = array<i64: 32, 64>}, {pipeline_mode = #tpu.pipeline_mode<synchronous>, transform_indices = @transform_7, window_bounds = array<i64: 64, 32>}, {transform_indices = @transform_8, window_bounds = array<i64: 2, 8, 32>}]} {
    %c0_i32 = arith.constant 0 : i32
    %0 = arith.cmpi eq, %arg1, %c0_i32 : i32
    %1 = arith.extui %0 : i1 to i32
    %c0_i32_0 = arith.constant 0 : i32
    %2 = arith.cmpi ne, %1, %c0_i32_0 : i32
    scf.if %2 {
      %c0_40 = arith.constant 0 : index
      %c0_41 = arith.constant 0 : index
      %c0_42 = arith.constant 0 : index
      %102 = vector.load %arg2[%c0_40, %c0_41, %c0_42] : memref<2x8x32xf32, #tpu.memory_space<vmem>>, vector<2x8x32xf32>
      %103 = vector.shape_cast %102 : vector<2x8x32xf32> to vector<16x32xf32>
      %104 = arith.truncf %103 : vector<16x32xf32> to vector<16x32xbf16>
      %c0_43 = arith.constant 0 : index
      %c0_44 = arith.constant 0 : index
      %105 = vector.load %arg6[%c0_43, %c0_44] : memref<32x64xbf16, #tpu.memory_space<vmem>>, vector<32x64xbf16>
      %cst_45 = arith.constant dense<0.000000e+00> : vector<16x64xf32>
      %106 = tpu.matmul %104, %105, %cst_45 {dimension_numbers = #tpu.dot_dimension_numbers<[1], [0], [0], [1], [0, 0, 1, 1], [], []>} : vector<16x32xbf16>, vector<32x64xbf16>, vector<16x64xf32> -> vector<16x64xf32>
      %cst_46 = arith.constant 2.500000e-01 : f32
      %107 = vector.broadcast %cst_46 : f32 to vector<16x64xf32>
      %108 = arith.mulf %106, %107 : vector<16x64xf32>
      %109 = arith.truncf %108 : vector<16x64xf32> to vector<16x64xbf16>
      %110 = vector.shape_cast %109 : vector<16x64xbf16> to vector<2x8x64xbf16>
      %c0_47 = arith.constant 0 : index
      %c0_48 = arith.constant 0 : index
      %c0_49 = arith.constant 0 : index
      %111 = vector.load %arg11[%c0_47, %c0_48, %c0_49] : memref<2x8x64xbf16, #tpu.memory_space<vmem>>, vector<2x8x64xbf16>
      tpu.vector_store %arg11[%c0_47, %c0_48, %c0_49], %110 {strides = array<i32>} : memref<2x8x64xbf16, #tpu.memory_space<vmem>>, vector<2x8x64xbf16>,
      %cst_50 = arith.constant 0.000000e+00 : f32
      %112 = vector.broadcast %cst_50 : f32 to vector<2x8x64xf32>
      %c0_51 = arith.constant 0 : index
      %c0_52 = arith.constant 0 : index
      %c0_53 = arith.constant 0 : index
      %113 = vector.load %arg12[%c0_51, %c0_52, %c0_53] : memref<2x8x64xf32, #tpu.memory_space<vmem>>, vector<2x8x64xf32>
      tpu.vector_store %arg12[%c0_51, %c0_52, %c0_53], %112 {strides = array<i32>} : memref<2x8x64xf32, #tpu.memory_space<vmem>>, vector<2x8x64xf32>,
    } else {
    }
    %c0 = arith.constant 0 : index
    %c0_1 = arith.constant 0 : index
    %c0_2 = arith.constant 0 : index
    %3 = vector.load %arg3[%c0, %c0_1, %c0_2] : memref<2x8x32xf32, #tpu.memory_space<vmem>>, vector<2x8x32xf32>
    %4 = vector.shape_cast %3 : vector<2x8x32xf32> to vector<16x32xf32>
    %5 = arith.truncf %4 : vector<16x32xf32> to vector<16x32xbf16>
    %c0_3 = arith.constant 0 : index
    %c0_4 = arith.constant 0 : index
    %c0_5 = arith.constant 0 : index
    %6 = vector.load %arg4[%c0_3, %c0_4, %c0_5] : memref<2x8x32xf32, #tpu.memory_space<vmem>>, vector<2x8x32xf32>
    %7 = vector.shape_cast %6 : vector<2x8x32xf32> to vector<16x32xf32>
    %8 = arith.truncf %7 : vector<16x32xf32> to vector<16x32xbf16>
    %c0_6 = arith.constant 0 : index
    %c0_7 = arith.constant 0 : index
    %9 = vector.load %arg7[%c0_6, %c0_7] : memref<32x64xbf16, #tpu.memory_space<vmem>>, vector<32x64xbf16>
    %cst = arith.constant dense<0.000000e+00> : vector<16x64xf32>
    %10 = tpu.matmul %5, %9, %cst {dimension_numbers = #tpu.dot_dimension_numbers<[1], [0], [0], [1], [0, 0, 1, 1], [], []>} : vector<16x32xbf16>, vector<32x64xbf16>, vector<16x64xf32> -> vector<16x64xf32>
    %c0_8 = arith.constant 0 : index
    %c0_9 = arith.constant 0 : index
    %11 = vector.load %arg8[%c0_8, %c0_9] : memref<32x64xbf16, #tpu.memory_space<vmem>>, vector<32x64xbf16>
    %cst_10 = arith.constant dense<0.000000e+00> : vector<16x64xf32>
    %12 = tpu.matmul %8, %11, %cst_10 {dimension_numbers = #tpu.dot_dimension_numbers<[1], [0], [0], [1], [0, 0, 1, 1], [], []>} : vector<16x32xbf16>, vector<32x64xbf16>, vector<16x64xf32> -> vector<16x64xf32>
    %13 = arith.truncf %10 : vector<16x64xf32> to vector<16x64xbf16>
    %14 = vector.shape_cast %13 : vector<16x64xbf16> to vector<2x8x64xbf16>
    %15 = arith.truncf %12 : vector<16x64xf32> to vector<16x64xbf16>
    %16 = vector.shape_cast %15 : vector<16x64xbf16> to vector<2x8x64xbf16>
    %c0_11 = arith.constant 0 : index
    %c0_12 = arith.constant 0 : index
    %17 = vector.load %arg5[%c0_11, %c0_12] : memref<8x8xf32, #tpu.memory_space<vmem>>, vector<8x8xf32>
    %c0_13 = arith.constant 0 : index
    %c0_14 = arith.constant 0 : index
    %c0_15 = arith.constant 0 : index
    %18 = vector.load %arg11[%c0_13, %c0_14, %c0_15] : memref<2x8x64xbf16, #tpu.memory_space<vmem>>, vector<2x8x64xbf16>
    %19 = vector.extract_strided_slice %18 {offsets = [0, 0, 0], sizes = [2, 8, 16], strides = [1, 1, 1]} : vector<2x8x64xbf16> to vector<2x8x16xbf16>
    %20 = vector.extract_strided_slice %14 {offsets = [0, 0, 0], sizes = [2, 8, 16], strides = [1, 1, 1]} : vector<2x8x64xbf16> to vector<2x8x16xbf16>
    %21 = vector.extract_strided_slice %16 {offsets = [0, 0, 0], sizes = [2, 8, 16], strides = [1, 1, 1]} : vector<2x8x64xbf16> to vector<2x8x16xbf16>
    "tpu.trace_start"() <{level = 10 : i32, message = "nle,nse->nls"}> : () -> ()
    %cst_16 = arith.constant dense<0.000000e+00> : vector<2x8x8xf32>
    %22 = tpu.matmul %19, %20, %cst_16 {dimension_numbers = #tpu.dot_dimension_numbers<[2], [2], [1], [1], [0, 0, 0, 1, 1, 1], [0], [0]>} : vector<2x8x16xbf16>, vector<2x8x16xbf16>, vector<2x8x8xf32> -> vector<2x8x8xf32>
    "tpu.trace_stop"() : () -> ()
    %23 = vector.shape_cast %17 : vector<8x8xf32> to vector<1x8x8xf32>
    %24 = vector.broadcast %23 : vector<1x8x8xf32> to vector<2x8x8xf32>
    %25 = arith.addf %22, %24 : vector<2x8x8xf32>
    %cst_17 = arith.constant dense<0xFF800000> : vector<8x8xf32>
    %26 = vector.multi_reduction <maximumf>, %25, %cst_17 [0] : vector<2x8x8xf32> to vector<8x8xf32>
    %27 = vector.shape_cast %26 : vector<8x8xf32> to vector<1x8x8xf32>
    %28 = vector.broadcast %27 : vector<1x8x8xf32> to vector<2x8x8xf32>
    %29 = arith.subf %25, %28 : vector<2x8x8xf32>
    %30 = math.exp %29 : vector<2x8x8xf32>
    %cst_18 = arith.constant dense<0.000000e+00> : vector<8x8xf32>
    %31 = vector.multi_reduction <add>, %30, %cst_18 [0] : vector<2x8x8xf32> to vector<8x8xf32>
    %32 = vector.shape_cast %31 : vector<8x8xf32> to vector<1x8x8xf32>
    %33 = tpu.reciprocal %32 {approx = true} : vector<1x8x8xf32> -> vector<1x8x8xf32>
    %34 = vector.broadcast %33 : vector<1x8x8xf32> to vector<2x8x8xf32>
    %35 = arith.mulf %30, %34 : vector<2x8x8xf32>
    %36 = arith.truncf %35 : vector<2x8x8xf32> to vector<2x8x8xbf16>
    "tpu.trace_start"() <{level = 10 : i32, message = "nls,nse->nle"}> : () -> ()
    %cst_19 = arith.constant dense<0.000000e+00> : vector<2x8x16xf32>
    %37 = tpu.matmul %36, %21, %cst_19 {dimension_numbers = #tpu.dot_dimension_numbers<[2], [1], [1], [2], [0, 0, 0, 1, 1, 2], [0], [0]>} : vector<2x8x8xbf16>, vector<2x8x16xbf16>, vector<2x8x16xf32> -> vector<2x8x16xf32>
    "tpu.trace_stop"() : () -> ()
    %38 = vector.extract_strided_slice %18 {offsets = [0, 0, 16], sizes = [2, 8, 16], strides = [1, 1, 1]} : vector<2x8x64xbf16> to vector<2x8x16xbf16>
    %39 = vector.extract_strided_slice %14 {offsets = [0, 0, 16], sizes = [2, 8, 16], strides = [1, 1, 1]} : vector<2x8x64xbf16> to vector<2x8x16xbf16>
    %40 = vector.extract_strided_slice %16 {offsets = [0, 0, 16], sizes = [2, 8, 16], strides = [1, 1, 1]} : vector<2x8x64xbf16> to vector<2x8x16xbf16>
    "tpu.trace_start"() <{level = 10 : i32, message = "nle,nse->nls"}> : () -> ()
    %cst_20 = arith.constant dense<0.000000e+00> : vector<2x8x8xf32>
    %41 = tpu.matmul %38, %39, %cst_20 {dimension_numbers = #tpu.dot_dimension_numbers<[2], [2], [1], [1], [0, 0, 0, 1, 1, 1], [0], [0]>} : vector<2x8x16xbf16>, vector<2x8x16xbf16>, vector<2x8x8xf32> -> vector<2x8x8xf32>
    "tpu.trace_stop"() : () -> ()
    %42 = vector.shape_cast %17 : vector<8x8xf32> to vector<1x8x8xf32>
    %43 = vector.broadcast %42 : vector<1x8x8xf32> to vector<2x8x8xf32>
    %44 = arith.addf %41, %43 : vector<2x8x8xf32>
    %cst_21 = arith.constant dense<0xFF800000> : vector<8x8xf32>
    %45 = vector.multi_reduction <maximumf>, %44, %cst_21 [0] : vector<2x8x8xf32> to vector<8x8xf32>
    %46 = vector.shape_cast %45 : vector<8x8xf32> to vector<1x8x8xf32>
    %47 = vector.broadcast %46 : vector<1x8x8xf32> to vector<2x8x8xf32>
    %48 = arith.subf %44, %47 : vector<2x8x8xf32>
    %49 = math.exp %48 : vector<2x8x8xf32>
    %cst_22 = arith.constant dense<0.000000e+00> : vector<8x8xf32>
    %50 = vector.multi_reduction <add>, %49, %cst_22 [0] : vector<2x8x8xf32> to vector<8x8xf32>
    %51 = vector.shape_cast %50 : vector<8x8xf32> to vector<1x8x8xf32>
    %52 = tpu.reciprocal %51 {approx = true} : vector<1x8x8xf32> -> vector<1x8x8xf32>
    %53 = vector.broadcast %52 : vector<1x8x8xf32> to vector<2x8x8xf32>
    %54 = arith.mulf %49, %53 : vector<2x8x8xf32>
    %55 = arith.truncf %54 : vector<2x8x8xf32> to vector<2x8x8xbf16>
    "tpu.trace_start"() <{level = 10 : i32, message = "nls,nse->nle"}> : () -> ()
    %cst_23 = arith.constant dense<0.000000e+00> : vector<2x8x16xf32>
    %56 = tpu.matmul %55, %40, %cst_23 {dimension_numbers = #tpu.dot_dimension_numbers<[2], [1], [1], [2], [0, 0, 0, 1, 1, 2], [0], [0]>} : vector<2x8x8xbf16>, vector<2x8x16xbf16>, vector<2x8x16xf32> -> vector<2x8x16xf32>
    "tpu.trace_stop"() : () -> ()
    %57 = vector.extract_strided_slice %18 {offsets = [0, 0, 32], sizes = [2, 8, 16], strides = [1, 1, 1]} : vector<2x8x64xbf16> to vector<2x8x16xbf16>
    %58 = vector.extract_strided_slice %14 {offsets = [0, 0, 32], sizes = [2, 8, 16], strides = [1, 1, 1]} : vector<2x8x64xbf16> to vector<2x8x16xbf16>
    %59 = vector.extract_strided_slice %16 {offsets = [0, 0, 32], sizes = [2, 8, 16], strides = [1, 1, 1]} : vector<2x8x64xbf16> to vector<2x8x16xbf16>
    "tpu.trace_start"() <{level = 10 : i32, message = "nle,nse->nls"}> : () -> ()
    %cst_24 = arith.constant dense<0.000000e+00> : vector<2x8x8xf32>
    %60 = tpu.matmul %57, %58, %cst_24 {dimension_numbers = #tpu.dot_dimension_numbers<[2], [2], [1], [1], [0, 0, 0, 1, 1, 1], [0], [0]>} : vector<2x8x16xbf16>, vector<2x8x16xbf16>, vector<2x8x8xf32> -> vector<2x8x8xf32>
    "tpu.trace_stop"() : () -> ()
    %61 = vector.shape_cast %17 : vector<8x8xf32> to vector<1x8x8xf32>
    %62 = vector.broadcast %61 : vector<1x8x8xf32> to vector<2x8x8xf32>
    %63 = arith.addf %60, %62 : vector<2x8x8xf32>
    %cst_25 = arith.constant dense<0xFF800000> : vector<8x8xf32>
    %64 = vector.multi_reduction <maximumf>, %63, %cst_25 [0] : vector<2x8x8xf32> to vector<8x8xf32>
    %65 = vector.shape_cast %64 : vector<8x8xf32> to vector<1x8x8xf32>
    %66 = vector.broadcast %65 : vector<1x8x8xf32> to vector<2x8x8xf32>
    %67 = arith.subf %63, %66 : vector<2x8x8xf32>
    %68 = math.exp %67 : vector<2x8x8xf32>
    %cst_26 = arith.constant dense<0.000000e+00> : vector<8x8xf32>
    %69 = vector.multi_reduction <add>, %68, %cst_26 [0] : vector<2x8x8xf32> to vector<8x8xf32>
    %70 = vector.shape_cast %69 : vector<8x8xf32> to vector<1x8x8xf32>
    %71 = tpu.reciprocal %70 {approx = true} : vector<1x8x8xf32> -> vector<1x8x8xf32>
    %72 = vector.broadcast %71 : vector<1x8x8xf32> to vector<2x8x8xf32>
    %73 = arith.mulf %68, %72 : vector<2x8x8xf32>
    %74 = arith.truncf %73 : vector<2x8x8xf32> to vector<2x8x8xbf16>
    "tpu.trace_start"() <{level = 10 : i32, message = "nls,nse->nle"}> : () -> ()
    %cst_27 = arith.constant dense<0.000000e+00> : vector<2x8x16xf32>
    %75 = tpu.matmul %74, %59, %cst_27 {dimension_numbers = #tpu.dot_dimension_numbers<[2], [1], [1], [2], [0, 0, 0, 1, 1, 2], [0], [0]>} : vector<2x8x8xbf16>, vector<2x8x16xbf16>, vector<2x8x16xf32> -> vector<2x8x16xf32>
    "tpu.trace_stop"() : () -> ()
    %76 = vector.extract_strided_slice %18 {offsets = [0, 0, 48], sizes = [2, 8, 16], strides = [1, 1, 1]} : vector<2x8x64xbf16> to vector<2x8x16xbf16>
    %77 = vector.extract_strided_slice %14 {offsets = [0, 0, 48], sizes = [2, 8, 16], strides = [1, 1, 1]} : vector<2x8x64xbf16> to vector<2x8x16xbf16>
    %78 = vector.extract_strided_slice %16 {offsets = [0, 0, 48], sizes = [2, 8, 16], strides = [1, 1, 1]} : vector<2x8x64xbf16> to vector<2x8x16xbf16>
    "tpu.trace_start"() <{level = 10 : i32, message = "nle,nse->nls"}> : () -> ()
    %cst_28 = arith.constant dense<0.000000e+00> : vector<2x8x8xf32>
    %79 = tpu.matmul %76, %77, %cst_28 {dimension_numbers = #tpu.dot_dimension_numbers<[2], [2], [1], [1], [0, 0, 0, 1, 1, 1], [0], [0]>} : vector<2x8x16xbf16>, vector<2x8x16xbf16>, vector<2x8x8xf32> -> vector<2x8x8xf32>
    "tpu.trace_stop"() : () -> ()
    %80 = vector.shape_cast %17 : vector<8x8xf32> to vector<1x8x8xf32>
    %81 = vector.broadcast %80 : vector<1x8x8xf32> to vector<2x8x8xf32>
    %82 = arith.addf %79, %81 : vector<2x8x8xf32>
    %cst_29 = arith.constant dense<0xFF800000> : vector<8x8xf32>
    %83 = vector.multi_reduction <maximumf>, %82, %cst_29 [0] : vector<2x8x8xf32> to vector<8x8xf32>
    %84 = vector.shape_cast %83 : vector<8x8xf32> to vector<1x8x8xf32>
    %85 = vector.broadcast %84 : vector<1x8x8xf32> to vector<2x8x8xf32>
    %86 = arith.subf %82, %85 : vector<2x8x8xf32>
    %87 = math.exp %86 : vector<2x8x8xf32>
    %cst_30 = arith.constant dense<0.000000e+00> : vector<8x8xf32>
    %88 = vector.multi_reduction <add>, %87, %cst_30 [0] : vector<2x8x8xf32> to vector<8x8xf32>
    %89 = vector.shape_cast %88 : vector<8x8xf32> to vector<1x8x8xf32>
    %90 = tpu.reciprocal %89 {approx = true} : vector<1x8x8xf32> -> vector<1x8x8xf32>
    %91 = vector.broadcast %90 : vector<1x8x8xf32> to vector<2x8x8xf32>
    %92 = arith.mulf %87, %91 : vector<2x8x8xf32>
    %93 = arith.truncf %92 : vector<2x8x8xf32> to vector<2x8x8xbf16>
    "tpu.trace_start"() <{level = 10 : i32, message = "nls,nse->nle"}> : () -> ()
    %cst_31 = arith.constant dense<0.000000e+00> : vector<2x8x16xf32>
    %94 = tpu.matmul %93, %78, %cst_31 {dimension_numbers = #tpu.dot_dimension_numbers<[2], [1], [1], [2], [0, 0, 0, 1, 1, 2], [0], [0]>} : vector<2x8x8xbf16>, vector<2x8x16xbf16>, vector<2x8x16xf32> -> vector<2x8x16xf32>
    "tpu.trace_stop"() : () -> ()
    %c0_32 = arith.constant 0 : index
    %c0_33 = arith.constant 0 : index
    %c0_34 = arith.constant 0 : index
    %95 = vector.load %arg12[%c0_32, %c0_33, %c0_34] : memref<2x8x64xf32, #tpu.memory_space<vmem>>, vector<2x8x64xf32>
    %96 = tpu.concatenate %37, %56, %75, %94 in 2 : vector<2x8x16xf32>, vector<2x8x16xf32>, vector<2x8x16xf32>, vector<2x8x16xf32> -> vector<2x8x64xf32>
    %97 = arith.addf %95, %96 : vector<2x8x64xf32>
    %c0_35 = arith.constant 0 : index
    %c0_36 = arith.constant 0 : index
    %c0_37 = arith.constant 0 : index
    %98 = vector.load %arg12[%c0_35, %c0_36, %c0_37] : memref<2x8x64xf32, #tpu.memory_space<vmem>>, vector<2x8x64xf32>
    tpu.vector_store %arg12[%c0_35, %c0_36, %c0_37], %97 {strides = array<i32>} : memref<2x8x64xf32, #tpu.memory_space<vmem>>, vector<2x8x64xf32>,
    %c0_i32_38 = arith.constant 0 : i32
    %99 = arith.cmpi eq, %arg1, %c0_i32_38 : i32
    %100 = arith.extui %99 : i1 to i32
    %c0_i32_39 = arith.constant 0 : i32
    %101 = arith.cmpi ne, %100, %c0_i32_39 : i32
    scf.if %101 {
      %c0_40 = arith.constant 0 : index
      %c0_41 = arith.constant 0 : index
      %c0_42 = arith.constant 0 : index
      %102 = vector.load %arg12[%c0_40, %c0_41, %c0_42] : memref<2x8x64xf32, #tpu.memory_space<vmem>>, vector<2x8x64xf32>
      %103 = arith.truncf %102 : vector<2x8x64xf32> to vector<2x8x64xbf16>
      %104 = vector.shape_cast %103 : vector<2x8x64xbf16> to vector<16x64xbf16>
      %c0_43 = arith.constant 0 : index
      %c0_44 = arith.constant 0 : index
      %105 = vector.load %arg9[%c0_43, %c0_44] : memref<64x32xbf16, #tpu.memory_space<vmem>>, vector<64x32xbf16>
      %cst_45 = arith.constant dense<0.000000e+00> : vector<16x32xf32>
      %106 = tpu.matmul %104, %105, %cst_45 {dimension_numbers = #tpu.dot_dimension_numbers<[1], [0], [0], [1], [0, 0, 1, 1], [], []>} : vector<16x64xbf16>, vector<64x32xbf16>, vector<16x32xf32> -> vector<16x32xf32>
      %107 = vector.shape_cast %106 : vector<16x32xf32> to vector<2x8x32xf32>
      %c0_46 = arith.constant 0 : index
      %c0_47 = arith.constant 0 : index
      %c0_48 = arith.constant 0 : index
      %108 = vector.load %arg10[%c0_46, %c0_47, %c0_48] : memref<2x8x32xf32, #tpu.memory_space<vmem>>, vector<2x8x32xf32>
      tpu.vector_store %arg10[%c0_46, %c0_47, %c0_48], %107 {strides = array<i32>} : memref<2x8x32xf32, #tpu.memory_space<vmem>>, vector<2x8x32xf32>,
    } else {
    }
    return
  }
  func.func @transform_0(%arg0: i32, %arg1: i32) -> (i32, i32, i32) {
    %c0_i32 = arith.constant 0 : i32
    %c0_i32_0 = arith.constant 0 : i32
    %c0_i32_1 = arith.constant 0 : i32
    return %c0_i32, %arg0, %c0_i32_0 : i32, i32, i32
  }
  func.func @transform_1(%arg0: i32, %arg1: i32) -> (i32, i32, i32) {
    %c0_i32 = arith.constant 0 : i32
    %c0_i32_0 = arith.constant 0 : i32
    %c0_i32_1 = arith.constant 0 : i32
    return %c0_i32, %arg1, %c0_i32_0 : i32, i32, i32
  }
  func.func @transform_2(%arg0: i32, %arg1: i32) -> (i32, i32, i32) {
    %c0_i32 = arith.constant 0 : i32
    %c0_i32_0 = arith.constant 0 : i32
    %c0_i32_1 = arith.constant 0 : i32
    return %c0_i32, %arg1, %c0_i32_0 : i32, i32, i32
  }
  func.func @transform_3(%arg0: i32, %arg1: i32) -> (i32, i32) {
    %c0_i32 = arith.constant 0 : i32
    return %arg0, %arg1 : i32, i32
  }
  func.func @transform_4(%arg0: i32, %arg1: i32) -> (i32, i32) {
    %c0_i32 = arith.constant 0 : i32
    %c0_i32_0 = arith.constant 0 : i32
    %c0_i32_1 = arith.constant 0 : i32
    return %c0_i32, %c0_i32_0 : i32, i32
  }
  func.func @transform_5(%arg0: i32, %arg1: i32) -> (i32, i32) {
    %c0_i32 = arith.constant 0 : i32
    %c0_i32_0 = arith.constant 0 : i32
    %c0_i32_1 = arith.constant 0 : i32
    return %c0_i32, %c0_i32_0 : i32, i32
  }
  func.func @transform_6(%arg0: i32, %arg1: i32) -> (i32, i32) {
    %c0_i32 = arith.constant 0 : i32
    %c0_i32_0 = arith.constant 0 : i32
    %c0_i32_1 = arith.constant 0 : i32
    return %c0_i32, %c0_i32_0 : i32, i32
  }
  func.func @transform_7(%arg0: i32, %arg1: i32) -> (i32, i32) {
    %c0_i32 = arith.constant 0 : i32
    %c0_i32_0 = arith.constant 0 : i32
    %c0_i32_1 = arith.constant 0 : i32
    return %c0_i32, %c0_i32_0 : i32, i32
  }
  func.func @transform_8(%arg0: i32, %arg1: i32) -> (i32, i32, i32) {
    %c0_i32 = arith.constant 0 : i32
    %c0_i32_0 = arith.constant 0 : i32
    %c0_i32_1 = arith.constant 0 : i32
    return %c0_i32, %arg0, %c0_i32_0 : i32, i32, i32
  }
}

</mosaic_0001>

<llo_original>
// kernel: tpu_custom_call.1
$region0: #{tpu_custom_call.1}
  #allocation0 [shape = 'u32[]', space=smem, size = 0x4, offset = 0x4, fixed_abs, tag = 'smem constant byte address 0x4 - core index']
  #allocation1 [shape = 'u32[144,128]{1,0:T(1,128)}', space=vmem, size = 0x12000, scoped, tag = 'internal scratch']
  #allocation2 [shape = 'bf16[2,8,64]{2,1,0:T(8,128)(2,1)}', space=vmem, size = 0x1000, scoped, tag = 'scratch operand']
  #allocation3 [shape = 'f32[2,8,64]{2,1,0:T(8,128)}', space=vmem, size = 0x2000, scoped, tag = 'scratch operand']
  %s0 = inlined_call_operand.vmem [shape: f32[2,8,32], index: 0, kind: input, shape index: {}]
  %s1 = inlined_call_operand.vmem [shape: f32[2,8,32], index: 1, kind: input, shape index: {}]
  %s2 = inlined_call_operand.vmem [shape: f32[2,8,32], index: 2, kind: input, shape index: {}]
  %s3 = inlined_call_operand.vmem [shape: f32[8,8], index: 3, kind: input, shape index: {}]
  %s4 = inlined_call_operand.hbm [shape: bf16[32,64], index: 4, kind: input, shape index: {}]
  %s5 = inlined_call_operand.hbm [shape: bf16[32,64], index: 5, kind: input, shape index: {}]
  %s6 = inlined_call_operand.hbm [shape: bf16[32,64], index: 6, kind: input, shape index: {}]
  %s7 = inlined_call_operand.vmem [shape: bf16[64,32], index: 7, kind: input, shape index: {}]
  %s8 = inlined_call_operand.hbm [shape: f32[2,8,32], index: 8, kind: output, shape index: {}]
  %s9 = sld [smem:[#allocation0]]
  $region62: #{tpu_custom_call.1} parent=0
    _
  %s11 = ssub.s32 1, %s9
  %s12 = scalar_select 0, %s11, %s9
  $region1: #{tpu_custom_call.1} parent=0
    #allocation4 [shape = 'u8[8192]{0}', space=vmem, size = 0x2000, scoped, tag = 'input window, operand 4, single buffered']
    #allocation5 [shape = 's32[1]{0}', space=sflag, size = 0x4, scoped, tag = 'scoped memory for tpu_custom_call.1']
    #allocation6 [shape = 's32[1]{0}', space=sflag, size = 0x4, scoped, tag = 'scoped memory for tpu_custom_call.1']
    #allocation7 [shape = 'u8[8192]{0}', space=vmem, size = 0x2000, scoped, tag = 'input window, operand 5, single buffered']
    #allocation8 [shape = 's32[1]{0}', space=sflag, size = 0x4, scoped, tag = 'scoped memory for tpu_custom_call.1']
    #allocation9 [shape = 'u8[8192]{0}', space=vmem, size = 0x2000, scoped, tag = 'input window, operand 6, single buffered']
    #allocation10 [shape = 'u8[8192]{0}', space=vmem, size = 0x2000, scoped, tag = 'output window, operand 0, single buffered']
    %13 = vsyncpa [#allocation5], 0
    %14 = vsyncpa [#allocation8], 0
    %15 = vsyncpa [#allocation6], 0
    // Predicated region
    $region2: #{tpu_custom_call.1} parent=1 // pred_check
      _
    $region3: #{tpu_custom_call.1} parent=1 // pred_check_branch
      %17 = sbr.rel (0) target = $region5
    $region4: #{tpu_custom_call.1} parent=1 // pred_region
      _
    $region5: #{tpu_custom_call.1} parent=1 // pred_fallthru
      _
    // Predicated region
    $region6: #{tpu_custom_call.1} parent=1 // pred_check
      _
    $region7: #{tpu_custom_call.1} parent=1 // pred_check_branch
      %19 = sbr.rel (0) target = $region9
    $region8: #{tpu_custom_call.1} parent=1 // pred_region
      _
    $region9: #{tpu_custom_call.1} parent=1 // pred_fallthru
      _
    // Predicated region
    $region10: #{tpu_custom_call.1} parent=1 // pred_check
      _
    $region11: #{tpu_custom_call.1} parent=1 // pred_check_branch
      %21 = sbr.rel (0) target = $region13
    $region12: #{tpu_custom_call.1} parent=1 // pred_region
      _
    $region13: #{tpu_custom_call.1} parent=1 // pred_fallthru
      _
    // Predicated region
    $region14: #{tpu_custom_call.1} parent=1 // pred_check
      _
    $region15: #{tpu_custom_call.1} parent=1 // pred_check_branch
      %23 = sbr.rel (0) target = $region17
    $region16: #{tpu_custom_call.1} parent=1 // pred_region
      _
    $region17: #{tpu_custom_call.1} parent=1 // pred_fallthru
      _
    // Predicated region
    $region18: #{tpu_custom_call.1} parent=1 // pred_check
      _
    $region19: #{tpu_custom_call.1} parent=1 // pred_check_branch
      %25 = sbr.rel (0) target = $region21
    $region20: #{tpu_custom_call.1} parent=1 // pred_region
      %s27 = ssub.s32 256, 256
      %28 = vsyncadd [#allocation5], %s27
      %s29 = sshll.u32 [#allocation4], 4
      %s30 = int_to_ptr.vmem [resolvable:$true] %s29
      %35 = dma.hbm_to_vmem [thread:$0]  %s4, 256, %s30, [#allocation5], 64, 64, 4
    $region21: #{tpu_custom_call.1} parent=1 // pred_fallthru
      _
    // Predicated region
    $region22: #{tpu_custom_call.1} parent=1 // pred_check
      _
    $region23: #{tpu_custom_call.1} parent=1 // pred_check_branch
      %37 = sbr.rel (0) target = $region25
    $region24: #{tpu_custom_call.1} parent=1 // pred_region
      %s39 = ssub.s32 256, 256
      %40 = vsyncadd [#allocation8], %s39
      %s41 = sshll.u32 [#allocation7], 4
      %s42 = int_to_ptr.vmem [resolvable:$true] %s41
      %47 = dma.hbm_to_vmem [thread:$0]  %s5, 256, %s42, [#allocation8], 64, 64, 4
    $region25: #{tpu_custom_call.1} parent=1 // pred_fallthru
      _
    // Predicated region
    $region26: #{tpu_custom_call.1} parent=1 // pred_check
      _
    $region27: #{tpu_custom_call.1} parent=1 // pred_check_branch
      %49 = sbr.rel (0) target = $region29
    $region28: #{tpu_custom_call.1} parent=1 // pred_region
      %s51 = ssub.s32 256, 256
      %52 = vsyncadd [#allocation8], %s51
      %s53 = sshll.u32 [#allocation9], 4
      %s54 = int_to_ptr.vmem [resolvable:$true] %s53
      %59 = dma.hbm_to_vmem [thread:$0]  %s6, 256, %s54, [#allocation8], 64, 64, 4
    $region29: #{tpu_custom_call.1} parent=1 // pred_fallthru
      _
    // Predicated region
    $region30: #{tpu_custom_call.1} parent=1 // pred_check
      _
    $region31: #{tpu_custom_call.1} parent=1 // pred_check_branch
      %61 = sbr.rel (0) target = $region33
    $region32: #{tpu_custom_call.1} parent=1 // pred_region
      _
    $region33: #{tpu_custom_call.1} parent=1 // pred_fallthru
      _
    // Predicated region
    $region34: #{tpu_custom_call.1} parent=1 // pred_check
      _
    $region35: #{tpu_custom_call.1} parent=1 // pred_check_branch
      %63 = sbr.rel (0) target = $region37
    $region36: #{tpu_custom_call.1} parent=1 // pred_region
      %64 = dma.done [#allocation5], 256
    $region37: #{tpu_custom_call.1} parent=1 // pred_fallthru
      _
    // Predicated region
    $region38: #{tpu_custom_call.1} parent=1 // pred_check
      _
    $region39: #{tpu_custom_call.1} parent=1 // pred_check_branch
      %66 = sbr.rel (0) target = $region41
    $region40: #{tpu_custom_call.1} parent=1 // pred_region
      %67 = dma.done [#allocation8], 256
    $region41: #{tpu_custom_call.1} parent=1 // pred_fallthru
      _
    // Predicated region
    $region42: #{tpu_custom_call.1} parent=1 // pred_check
      _
    $region43: #{tpu_custom_call.1} parent=1 // pred_check_branch
      %69 = sbr.rel (0) target = $region45
    $region44: #{tpu_custom_call.1} parent=1 // pred_region
      %70 = dma.done [#allocation8], 256
    $region45: #{tpu_custom_call.1} parent=1 // pred_fallthru
      _
    %p72 = scmp.eq.s32.totalorder 0, 0
    // Predicated region
    $region46: #{tpu_custom_call.1} parent=1 // pred_check
      %p73 = pneg %p72
    $region47: #{tpu_custom_call.1} parent=1 // pred_check_branch
      %75 = sbr.rel (%p73) target = $region49
    $region48: #{tpu_custom_call.1} parent=1 // pred_region
      %v76 = vld [vmem:[%s0] sm:$0xff]
      %v77 = vld [vmem:[%s0 + $0x8] sm:$0xff]
      %v78 = vpack.c.bf16 %v77, %v76
      %v79 = vld [vmem:[#allocation4] sm:$0xf]
      %v80 = vld [vmem:[#allocation4 + $0x4] sm:$0xf]
      %v81 = vld [vmem:[#allocation4 + $0x8] sm:$0xf]
      %v82 = vld [vmem:[#allocation4 + $0xc] sm:$0xf]
      %v87 = vunpack.c.l.b16 %v79
      %v88 = vunpack.c.l.b16 %v80
      %v89 = vunpack.c.l.b16 %v81
      %v90 = vunpack.c.l.b16 %v82
      %v91 = vpack.c.b16 %v88, %v87
      %v92 = vpack.c.b16 %v90, %v89
      %vm95 = vcmask 261120
      %v97 = vsel %vm95, %v78, 0
      %99 = vmatprep.subr.bf16.mxu0 0
      %100 = vmatpush1.bf16.msra.mxu0 %v91
      %101 = vmatprep.subr.bf16.mxu0 0
      %102 = vmatpush1.bf16.msra.mxu0 %v92
      %103 = vmatprep.subr.bf16.mxu0 0
      %104 = vmatpush1.bf16.msra.mxu0 0
      %105 = vmatprep.subr.bf16.mxu0 0
      %106 = vmatpush1.bf16.msra.mxu0 0
      %107 = vmatprep.subr.bf16.mxu0 0
      %108 = vmatpush1.bf16.msra.mxu0 0
      %109 = vmatprep.subr.bf16.mxu0 0
      %110 = vmatpush1.bf16.msra.mxu0 0
      %111 = vmatprep.subr.bf16.mxu0 0
      %112 = vmatpush1.bf16.msra.mxu0 0
      %113 = vmatprep.subr.bf16.mxu0 0
      %114 = vmatpush1.bf16.msra.mxu0 0
      %115 = vmatprep.subr.bf16.mxu0 0
      %116 = vmatpush1.bf16.msra.mxu0 0
      %117 = vmatprep.subr.bf16.mxu0 0
      %118 = vmatpush1.bf16.msra.mxu0 0
      %119 = vmatprep.subr.bf16.mxu0 0
      %120 = vmatpush1.bf16.msra.mxu0 0
      %121 = vmatprep.subr.bf16.mxu0 0
      %122 = vmatpush1.bf16.msra.mxu0 0
      %123 = vmatprep.subr.bf16.mxu0 0
      %124 = vmatpush1.bf16.msra.mxu0 0
      %125 = vmatprep.subr.bf16.mxu0 0
      %126 = vmatpush1.bf16.msra.mxu0 0
      %127 = vmatprep.subr.bf16.mxu0 0
      %128 = vmatpush1.bf16.msra.mxu0 0
      %129 = vmatprep.subr.bf16.mxu0 0
      %130 = vmatpush1.bf16.msra.mxu0 0
      %131 = vmatprep.mubr.bf16.mxu0 0
      %132 = vmatmul.mubr.bf16.gmra.mrb[0].mxu0 %v97
      %v133 = vpop.f32.mrb[0].mxu0
      %v134 = vadd.f32 0.0, %v133
      %v135 = vpop.f32.mrb[0].mxu0
      %v136 = vpop.f32.mrb[0].mxu0
      %v137 = vadd.f32 0.0, %v136
      %v138 = vpop.f32.mrb[0].mxu0
      %139 = vdwg.mxu0
      %v140 = vmul.f32 %v134, 0.25
      %v141 = vmul.f32 %v137, 0.25
      %v142 = vpack.c.bf16 %v141, %v140
      %v144 = vunpack.c.l.b16 %v142
      %v145 = vunpack.c.h.b16 %v142
      %v146 = vpack.c.b16 %v144, %v144
      %v147 = vpack.c.b16 %v145, %v145
      %vm150 = vcmask 519168
      %151 = vst.msk [vmem:[#allocation2] sm:$0xf] %vm150, %v146
      %152 = vst.msk [vmem:[#allocation2 + $0x4] sm:$0xf] %vm150, %v147
      %vm153 = vcmask 523264
      %154 = vst.msk [vmem:[#allocation3] sm:$0xff] %vm153, 0.0
      %155 = vst.msk [vmem:[#allocation3 + $0x8] sm:$0xff] %vm153, 0.0
    $region49: #{tpu_custom_call.1} parent=1 // pred_fallthru
      _
    %v156 = vld [vmem:[%s1] sm:$0xff]
    %v157 = vld [vmem:[%s1 + $0x8] sm:$0xff]
    %v158 = vpack.c.bf16 %v157, %v156
    %v159 = vld [vmem:[%s2] sm:$0xff]
    %v160 = vld [vmem:[%s2 + $0x8] sm:$0xff]
    %v161 = vpack.c.bf16 %v160, %v159
    %v162 = vld [vmem:[#allocation7] sm:$0xf]
    %v163 = vld [vmem:[#allocation7 + $0x4] sm:$0xf]
    %v164 = vld [vmem:[#allocation7 + $0x8] sm:$0xf]
    %v165 = vld [vmem:[#allocation7 + $0xc] sm:$0xf]
    %v170 = vunpack.c.l.b16 %v162
    %v171 = vunpack.c.l.b16 %v163
    %v172 = vunpack.c.l.b16 %v164
    %v173 = vunpack.c.l.b16 %v165
    %v174 = vpack.c.b16 %v171, %v170
    %v175 = vpack.c.b16 %v173, %v172
    %vm178 = vcmask 261120
    %v180 = vsel %vm178, %v158, 0
    %182 = vmatprep.subr.bf16.mxu0 0
    %183 = vmatpush1.bf16.msra.mxu0 %v174
    %184 = vmatprep.subr.bf16.mxu0 0
    %185 = vmatpush1.bf16.msra.mxu0 %v175
    %186 = vmatprep.subr.bf16.mxu0 0
    %187 = vmatpush1.bf16.msra.mxu0 0
    %188 = vmatprep.subr.bf16.mxu0 0
    %189 = vmatpush1.bf16.msra.mxu0 0
    %190 = vmatprep.subr.bf16.mxu0 0
    %191 = vmatpush1.bf16.msra.mxu0 0
    %192 = vmatprep.subr.bf16.mxu0 0
    %193 = vmatpush1.bf16.msra.mxu0 0
    %194 = vmatprep.subr.bf16.mxu0 0
    %195 = vmatpush1.bf16.msra.mxu0 0
    %196 = vmatprep.subr.bf16.mxu0 0
    %197 = vmatpush1.bf16.msra.mxu0 0
    %198 = vmatprep.subr.bf16.mxu0 0
    %199 = vmatpush1.bf16.msra.mxu0 0
    %200 = vmatprep.subr.bf16.mxu0 0
    %201 = vmatpush1.bf16.msra.mxu0 0
    %202 = vmatprep.subr.bf16.mxu0 0
    %203 = vmatpush1.bf16.msra.mxu0 0
    %204 = vmatprep.subr.bf16.mxu0 0
    %205 = vmatpush1.bf16.msra.mxu0 0
    %206 = vmatprep.subr.bf16.mxu0 0
    %207 = vmatpush1.bf16.msra.mxu0 0
    %208 = vmatprep.subr.bf16.mxu0 0
    %209 = vmatpush1.bf16.msra.mxu0 0
    %210 = vmatprep.subr.bf16.mxu0 0
    %211 = vmatpush1.bf16.msra.mxu0 0
    %212 = vmatprep.subr.bf16.mxu0 0
    %213 = vmatpush1.bf16.msra.mxu0 0
    %214 = vmatprep.mubr.bf16.mxu0 0
    %215 = vmatmul.mubr.bf16.gmra.mrb[0].mxu0 %v180
    %v216 = vpop.f32.mrb[0].mxu0
    %v217 = vadd.f32 0.0, %v216
    %v218 = vpop.f32.mrb[0].mxu0
    %v219 = vpop.f32.mrb[0].mxu0
    %v220 = vadd.f32 0.0, %v219
    %v221 = vpop.f32.mrb[0].mxu0
    %222 = vdwg.mxu0
    %v223 = vld [vmem:[#allocation9] sm:$0xf]
    %v224 = vld [vmem:[#allocation9 + $0x4] sm:$0xf]
    %v225 = vld [vmem:[#allocation9 + $0x8] sm:$0xf]
    %v226 = vld [vmem:[#allocation9 + $0xc] sm:$0xf]
    %v231 = vunpack.c.l.b16 %v223
    %v232 = vunpack.c.l.b16 %v224
    %v233 = vunpack.c.l.b16 %v225
    %v234 = vunpack.c.l.b16 %v226
    %v235 = vpack.c.b16 %v232, %v231
    %v236 = vpack.c.b16 %v234, %v233
    %v240 = vsel %vm178, %v161, 0
    %242 = vmatprep.subr.bf16.mxu0 0
    %243 = vmatpush1.bf16.msra.mxu0 %v235
    %244 = vmatprep.subr.bf16.mxu0 0
    %245 = vmatpush1.bf16.msra.mxu0 %v236
    %246 = vmatprep.subr.bf16.mxu0 0
    %247 = vmatpush1.bf16.msra.mxu0 0
    %248 = vmatprep.subr.bf16.mxu0 0
    %249 = vmatpush1.bf16.msra.mxu0 0
    %250 = vmatprep.subr.bf16.mxu0 0
    %251 = vmatpush1.bf16.msra.mxu0 0
    %252 = vmatprep.subr.bf16.mxu0 0
    %253 = vmatpush1.bf16.msra.mxu0 0
    %254 = vmatprep.subr.bf16.mxu0 0
    %255 = vmatpush1.bf16.msra.mxu0 0
    %256 = vmatprep.subr.bf16.mxu0 0
    %257 = vmatpush1.bf16.msra.mxu0 0
    %258 = vmatprep.subr.bf16.mxu0 0
    %259 = vmatpush1.bf16.msra.mxu0 0
    %260 = vmatprep.subr.bf16.mxu0 0
    %261 = vmatpush1.bf16.msra.mxu0 0
    %262 = vmatprep.subr.bf16.mxu0 0
    %263 = vmatpush1.bf16.msra.mxu0 0
    %264 = vmatprep.subr.bf16.mxu0 0
    %265 = vmatpush1.bf16.msra.mxu0 0
    %266 = vmatprep.subr.bf16.mxu0 0
    %267 = vmatpush1.bf16.msra.mxu0 0
    %268 = vmatprep.subr.bf16.mxu0 0
    %269 = vmatpush1.bf16.msra.mxu0 0
    %270 = vmatprep.subr.bf16.mxu0 0
    %271 = vmatpush1.bf16.msra.mxu0 0
    %272 = vmatprep.subr.bf16.mxu0 0
    %273 = vmatpush1.bf16.msra.mxu0 0
    %274 = vmatprep.mubr.bf16.mxu0 0
    %275 = vmatmul.mubr.bf16.gmra.mrb[0].mxu0 %v240
    %v276 = vpop.f32.mrb[0].mxu0
    %v277 = vadd.f32 0.0, %v276
    %v278 = vpop.f32.mrb[0].mxu0
    %v279 = vpop.f32.mrb[0].mxu0
    %v280 = vadd.f32 0.0, %v279
    %v281 = vpop.f32.mrb[0].mxu0
    %282 = vdwg.mxu0
    %v283 = vpack.c.bf16 %v220, %v217
    %v285 = vunpack.c.l.b16 %v283
    %v286 = vunpack.c.h.b16 %v283
    %v287 = vpack.c.b16 %v285, %v285
    %v288 = vpack.c.b16 %v286, %v286
    %v289 = vpack.c.bf16 %v280, %v277
    %v291 = vunpack.c.l.b16 %v289
    %v292 = vunpack.c.h.b16 %v289
    %v293 = vpack.c.b16 %v291, %v291
    %v294 = vpack.c.b16 %v292, %v292
    %v295 = vld [vmem:[%s3] sm:$0xff]
    %v296 = vld [vmem:[#allocation2] sm:$0xf]
    %v297 = vld [vmem:[#allocation2 + $0x4] sm:$0xf]
    %vm298 = vcmask 130048
    %v300 = vsel %vm298, %v296, 0
    %v303 = vsel %vm298, %v287, 0
    %305 = vmatprep.subr.bf16.mxu0 0
    %306 = vmatpush1.bf16.xpose.msra.mxu0 %v303
    %307 = vmatprep.subr.bf16.mxu0 0
    %308 = vmatpush1.bf16.xpose.msra.mxu0 0
    %309 = vmatprep.subr.bf16.mxu0 0
    %310 = vmatpush1.bf16.xpose.msra.mxu0 0
    %311 = vmatprep.subr.bf16.mxu0 0
    %312 = vmatpush1.bf16.xpose.msra.mxu0 0
    %313 = vmatprep.subr.bf16.mxu0 0
    %314 = vmatpush1.bf16.xpose.msra.mxu0 0
    %315 = vmatprep.subr.bf16.mxu0 0
    %316 = vmatpush1.bf16.xpose.msra.mxu0 0
    %317 = vmatprep.subr.bf16.mxu0 0
    %318 = vmatpush1.bf16.xpose.msra.mxu0 0
    %319 = vmatprep.subr.bf16.mxu0 0
    %320 = vmatpush1.bf16.xpose.msra.mxu0 0
    %321 = vmatprep.subr.bf16.mxu0 0
    %322 = vmatpush1.bf16.xpose.msra.mxu0 0
    %323 = vmatprep.subr.bf16.mxu0 0
    %324 = vmatpush1.bf16.xpose.msra.mxu0 0
    %325 = vmatprep.subr.bf16.mxu0 0
    %326 = vmatpush1.bf16.xpose.msra.mxu0 0
    %327 = vmatprep.subr.bf16.mxu0 0
    %328 = vmatpush1.bf16.xpose.msra.mxu0 0
    %329 = vmatprep.subr.bf16.mxu0 0
    %330 = vmatpush1.bf16.xpose.msra.mxu0 0
    %331 = vmatprep.subr.bf16.mxu0 0
    %332 = vmatpush1.bf16.xpose.msra.mxu0 0
    %333 = vmatprep.subr.bf16.mxu0 0
    %334 = vmatpush1.bf16.xpose.msra.mxu0 0
    %335 = vmatprep.subr.bf16.mxu0 0
    %336 = vmatpush1.bf16.xpose.msra.mxu0 0
    %337 = vmatprep.mubr.bf16.mxu0 0
    %338 = vmatmul.mubr.bf16.gmra.mrb[0].mxu0 %v300
    %v339 = vpop.f32.mrb[0].mxu0
    %v340 = vadd.f32 %v295, %v339
    %v341 = vpop.f32.mrb[0].mxu0
    %v342 = vpop.f32.mrb[0].mxu0
    %v343 = vpop.f32.mrb[0].mxu0
    %344 = vdwg.mxu0
    %v346 = vsel %vm298, %v297, 0
    %v349 = vsel %vm298, %v288, 0
    %351 = vmatprep.subr.bf16.mxu0 0
    %352 = vmatpush1.bf16.xpose.msra.mxu0 %v349
    %353 = vmatprep.subr.bf16.mxu0 0
    %354 = vmatpush1.bf16.xpose.msra.mxu0 0
    %355 = vmatprep.subr.bf16.mxu0 0
    %356 = vmatpush1.bf16.xpose.msra.mxu0 0
    %357 = vmatprep.subr.bf16.mxu0 0
    %358 = vmatpush1.bf16.xpose.msra.mxu0 0
    %359 = vmatprep.subr.bf16.mxu0 0
    %360 = vmatpush1.bf16.xpose.msra.mxu0 0
    %361 = vmatprep.subr.bf16.mxu0 0
    %362 = vmatpush1.bf16.xpose.msra.mxu0 0
    %363 = vmatprep.subr.bf16.mxu0 0
    %364 = vmatpush1.bf16.xpose.msra.mxu0 0
    %365 = vmatprep.subr.bf16.mxu0 0
    %366 = vmatpush1.bf16.xpose.msra.mxu0 0
    %367 = vmatprep.subr.bf16.mxu0 0
    %368 = vmatpush1.bf16.xpose.msra.mxu0 0
    %369 = vmatprep.subr.bf16.mxu0 0
    %370 = vmatpush1.bf16.xpose.msra.mxu0 0
    %371 = vmatprep.subr.bf16.mxu0 0
    %372 = vmatpush1.bf16.xpose.msra.mxu0 0
    %373 = vmatprep.subr.bf16.mxu0 0
    %374 = vmatpush1.bf16.xpose.msra.mxu0 0
    %375 = vmatprep.subr.bf16.mxu0 0
    %376 = vmatpush1.bf16.xpose.msra.mxu0 0
    %377 = vmatprep.subr.bf16.mxu0 0
    %378 = vmatpush1.bf16.xpose.msra.mxu0 0
    %379 = vmatprep.subr.bf16.mxu0 0
    %380 = vmatpush1.bf16.xpose.msra.mxu0 0
    %381 = vmatprep.subr.bf16.mxu0 0
    %382 = vmatpush1.bf16.xpose.msra.mxu0 0
    %383 = vmatprep.mubr.bf16.mxu0 0
    %384 = vmatmul.mubr.bf16.gmra.mrb[0].mxu0 %v346
    %v385 = vpop.f32.mrb[0].mxu0
    %v386 = vadd.f32 %v295, %v385
    %v387 = vpop.f32.mrb[0].mxu0
    %v388 = vpop.f32.mrb[0].mxu0
    %v389 = vpop.f32.mrb[0].mxu0
    %390 = vdwg.mxu0
    %vm391 = vcmask 64512
    %v392 = vsel %vm391, %v340, -inf
    %v393 = vsel %vm391, %v386, -inf
    %v394 = vmax.f32 %v392, %v393
    %v395 = vsub.f32 %v340, %v394
    %v396 = vsub.f32 %v386, %v394
    %v397 = vmul.f32 %v395, 1.442695
    %v398 = vpow.pop %v397
    %v399 = vmul.f32 %v396, 1.442695
    %v400 = vpow.pop %v399
    %v401 = vsel %vm391, %v398, 0.0
    %v402 = vsel %vm391, %v400, 0.0
    %v403 = vadd.f32 %v401, %v402
    %v404 = vrcp.pop %v403
    %v405 = vmul.f32 %v398, %v404
    %v406 = vmul.f32 %v400, %v404
    %v407 = vpack.c.bf16 %v405, %v405
    %v408 = vpack.c.bf16 %v406, %v406
    %v410 = vsel %vm391, %v407, 0
    %vm412 = vcmask 1043456
    %v414 = vsel %vm412, %v293, 0
    %416 = vmatprep.subr.bf16.mxu0 0
    %417 = vmatpush1.bf16.msra.mxu0 %v414
    %418 = vmatprep.subr.bf16.mxu0 0
    %419 = vmatpush1.bf16.msra.mxu0 0
    %420 = vmatprep.subr.bf16.mxu0 0
    %421 = vmatpush1.bf16.msra.mxu0 0
    %422 = vmatprep.subr.bf16.mxu0 0
    %423 = vmatpush1.bf16.msra.mxu0 0
    %424 = vmatprep.subr.bf16.mxu0 0
    %425 = vmatpush1.bf16.msra.mxu0 0
    %426 = vmatprep.subr.bf16.mxu0 0
    %427 = vmatpush1.bf16.msra.mxu0 0
    %428 = vmatprep.subr.bf16.mxu0 0
    %429 = vmatpush1.bf16.msra.mxu0 0
    %430 = vmatprep.subr.bf16.mxu0 0
    %431 = vmatpush1.bf16.msra.mxu0 0
    %432 = vmatprep.subr.bf16.mxu0 0
    %433 = vmatpush1.bf16.msra.mxu0 0
    %434 = vmatprep.subr.bf16.mxu0 0
    %435 = vmatpush1.bf16.msra.mxu0 0
    %436 = vmatprep.subr.bf16.mxu0 0
    %437 = vmatpush1.bf16.msra.mxu0 0
    %438 = vmatprep.subr.bf16.mxu0 0
    %439 = vmatpush1.bf16.msra.mxu0 0
    %440 = vmatprep.subr.bf16.mxu0 0
    %441 = vmatpush1.bf16.msra.mxu0 0
    %442 = vmatprep.subr.bf16.mxu0 0
    %443 = vmatpush1.bf16.msra.mxu0 0
    %444 = vmatprep.subr.bf16.mxu0 0
    %445 = vmatpush1.bf16.msra.mxu0 0
    %446 = vmatprep.subr.bf16.mxu0 0
    %447 = vmatpush1.bf16.msra.mxu0 0
    %448 = vmatprep.mubr.bf16.mxu0 0
    %449 = vmatmul.mubr.bf16.gmra.mrb[0].mxu0 %v410
    %v450 = vpop.f32.mrb[0].mxu0
    %v451 = vadd.f32 0.0, %v450
    %v452 = vpop.f32.mrb[0].mxu0
    %v453 = vpop.f32.mrb[0].mxu0
    %v454 = vpop.f32.mrb[0].mxu0
    %455 = vdwg.mxu0
    %v457 = vsel %vm391, %v408, 0
    %v460 = vsel %vm412, %v294, 0
    %462 = vmatprep.subr.bf16.mxu0 0
    %463 = vmatpush1.bf16.msra.mxu0 %v460
    %464 = vmatprep.subr.bf16.mxu0 0
    %465 = vmatpush1.bf16.msra.mxu0 0
    %466 = vmatprep.subr.bf16.mxu0 0
    %467 = vmatpush1.bf16.msra.mxu0 0
    %468 = vmatprep.subr.bf16.mxu0 0
    %469 = vmatpush1.bf16.msra.mxu0 0
    %470 = vmatprep.subr.bf16.mxu0 0
    %471 = vmatpush1.bf16.msra.mxu0 0
    %472 = vmatprep.subr.bf16.mxu0 0
    %473 = vmatpush1.bf16.msra.mxu0 0
    %474 = vmatprep.subr.bf16.mxu0 0
    %475 = vmatpush1.bf16.msra.mxu0 0
    %476 = vmatprep.subr.bf16.mxu0 0
    %477 = vmatpush1.bf16.msra.mxu0 0
    %478 = vmatprep.subr.bf16.mxu0 0
    %479 = vmatpush1.bf16.msra.mxu0 0
    %480 = vmatprep.subr.bf16.mxu0 0
    %481 = vmatpush1.bf16.msra.mxu0 0
    %482 = vmatprep.subr.bf16.mxu0 0
    %483 = vmatpush1.bf16.msra.mxu0 0
    %484 = vmatprep.subr.bf16.mxu0 0
    %485 = vmatpush1.bf16.msra.mxu0 0
    %486 = vmatprep.subr.bf16.mxu0 0
    %487 = vmatpush1.bf16.msra.mxu0 0
    %488 = vmatprep.subr.bf16.mxu0 0
    %489 = vmatpush1.bf16.msra.mxu0 0
    %490 = vmatprep.subr.bf16.mxu0 0
    %491 = vmatpush1.bf16.msra.mxu0 0
    %492 = vmatprep.subr.bf16.mxu0 0
    %493 = vmatpush1.bf16.msra.mxu0 0
    %494 = vmatprep.mubr.bf16.mxu0 0
    %495 = vmatmul.mubr.bf16.gmra.mrb[0].mxu0 %v457
    %v496 = vpop.f32.mrb[0].mxu0
    %v497 = vadd.f32 0.0, %v496
    %v498 = vpop.f32.mrb[0].mxu0
    %v499 = vpop.f32.mrb[0].mxu0
    %v500 = vpop.f32.mrb[0].mxu0
    %501 = vdwg.mxu0
    %v503 = vunpack.c.l.b16 %v296
    %v504 = vpack.c.b16 %v503, %v503
    %505 = vrot.lane.b32.xlu0 %v504, 112
    %v506 = vpop.permute.xlu0 %505
    %507 = vrot.lane.b32.xlu0 %v287, 112
    %v508 = vpop.permute.xlu0 %507
    %v510 = vsel %vm298, %v506, 0
    %v513 = vsel %vm298, %v508, 0
    %515 = vmatprep.subr.bf16.mxu0 0
    %516 = vmatpush1.bf16.xpose.msra.mxu0 %v513
    %517 = vmatprep.subr.bf16.mxu0 0
    %518 = vmatpush1.bf16.xpose.msra.mxu0 0
    %519 = vmatprep.subr.bf16.mxu0 0
    %520 = vmatpush1.bf16.xpose.msra.mxu0 0
    %521 = vmatprep.subr.bf16.mxu0 0
    %522 = vmatpush1.bf16.xpose.msra.mxu0 0
    %523 = vmatprep.subr.bf16.mxu0 0
    %524 = vmatpush1.bf16.xpose.msra.mxu0 0
    %525 = vmatprep.subr.bf16.mxu0 0
    %526 = vmatpush1.bf16.xpose.msra.mxu0 0
    %527 = vmatprep.subr.bf16.mxu0 0
    %528 = vmatpush1.bf16.xpose.msra.mxu0 0
    %529 = vmatprep.subr.bf16.mxu0 0
    %530 = vmatpush1.bf16.xpose.msra.mxu0 0
    %531 = vmatprep.subr.bf16.mxu0 0
    %532 = vmatpush1.bf16.xpose.msra.mxu0 0
    %533 = vmatprep.subr.bf16.mxu0 0
    %534 = vmatpush1.bf16.xpose.msra.mxu0 0
    %535 = vmatprep.subr.bf16.mxu0 0
    %536 = vmatpush1.bf16.xpose.msra.mxu0 0
    %537 = vmatprep.subr.bf16.mxu0 0
    %538 = vmatpush1.bf16.xpose.msra.mxu0 0
    %539 = vmatprep.subr.bf16.mxu0 0
    %540 = vmatpush1.bf16.xpose.msra.mxu0 0
    %541 = vmatprep.subr.bf16.mxu0 0
    %542 = vmatpush1.bf16.xpose.msra.mxu0 0
    %543 = vmatprep.subr.bf16.mxu0 0
    %544 = vmatpush1.bf16.xpose.msra.mxu0 0
    %545 = vmatprep.subr.bf16.mxu0 0
    %546 = vmatpush1.bf16.xpose.msra.mxu0 0
    %547 = vmatprep.mubr.bf16.mxu0 0
    %548 = vmatmul.mubr.bf16.gmra.mrb[0].mxu0 %v510
    %v549 = vpop.f32.mrb[0].mxu0
    %v550 = vadd.f32 %v295, %v549
    %v551 = vpop.f32.mrb[0].mxu0
    %v552 = vpop.f32.mrb[0].mxu0
    %v553 = vpop.f32.mrb[0].mxu0
    %554 = vdwg.mxu0
    %v556 = vunpack.c.l.b16 %v297
    %v557 = vpack.c.b16 %v556, %v556
    %558 = vrot.lane.b32.xlu0 %v557, 112
    %v559 = vpop.permute.xlu0 %558
    %560 = vrot.lane.b32.xlu0 %v288, 112
    %v561 = vpop.permute.xlu0 %560
    %v563 = vsel %vm298, %v559, 0
    %v566 = vsel %vm298, %v561, 0
    %568 = vmatprep.subr.bf16.mxu0 0
    %569 = vmatpush1.bf16.xpose.msra.mxu0 %v566
    %570 = vmatprep.subr.bf16.mxu0 0
    %571 = vmatpush1.bf16.xpose.msra.mxu0 0
    %572 = vmatprep.subr.bf16.mxu0 0
    %573 = vmatpush1.bf16.xpose.msra.mxu0 0
    %574 = vmatprep.subr.bf16.mxu0 0
    %575 = vmatpush1.bf16.xpose.msra.mxu0 0
    %576 = vmatprep.subr.bf16.mxu0 0
    %577 = vmatpush1.bf16.xpose.msra.mxu0 0
    %578 = vmatprep.subr.bf16.mxu0 0
    %579 = vmatpush1.bf16.xpose.msra.mxu0 0
    %580 = vmatprep.subr.bf16.mxu0 0
    %581 = vmatpush1.bf16.xpose.msra.mxu0 0
    %582 = vmatprep.subr.bf16.mxu0 0
    %583 = vmatpush1.bf16.xpose.msra.mxu0 0
    %584 = vmatprep.subr.bf16.mxu0 0
    %585 = vmatpush1.bf16.xpose.msra.mxu0 0
    %586 = vmatprep.subr.bf16.mxu0 0
    %587 = vmatpush1.bf16.xpose.msra.mxu0 0
    %588 = vmatprep.subr.bf16.mxu0 0
    %589 = vmatpush1.bf16.xpose.msra.mxu0 0
    %590 = vmatprep.subr.bf16.mxu0 0
    %591 = vmatpush1.bf16.xpose.msra.mxu0 0
    %592 = vmatprep.subr.bf16.mxu0 0
    %593 = vmatpush1.bf16.xpose.msra.mxu0 0
    %594 = vmatprep.subr.bf16.mxu0 0
    %595 = vmatpush1.bf16.xpose.msra.mxu0 0
    %596 = vmatprep.subr.bf16.mxu0 0
    %597 = vmatpush1.bf16.xpose.msra.mxu0 0
    %598 = vmatprep.subr.bf16.mxu0 0
    %599 = vmatpush1.bf16.xpose.msra.mxu0 0
    %600 = vmatprep.mubr.bf16.mxu0 0
    %601 = vmatmul.mubr.bf16.gmra.mrb[0].mxu0 %v563
    %v602 = vpop.f32.mrb[0].mxu0
    %v603 = vadd.f32 %v295, %v602
    %v604 = vpop.f32.mrb[0].mxu0
    %v605 = vpop.f32.mrb[0].mxu0
    %v606 = vpop.f32.mrb[0].mxu0
    %607 = vdwg.mxu0
    %v608 = vsel %vm391, %v550, -inf
    %v609 = vsel %vm391, %v603, -inf
    %v610 = vmax.f32 %v608, %v609
    %v611 = vsub.f32 %v550, %v610
    %v612 = vsub.f32 %v603, %v610
    %v613 = vmul.f32 %v611, 1.442695
    %v614 = vpow.pop %v613
    %v615 = vmul.f32 %v612, 1.442695
    %v616 = vpow.pop %v615
    %v617 = vsel %vm391, %v614, 0.0
    %v618 = vsel %vm391, %v616, 0.0
    %v619 = vadd.f32 %v617, %v618
    %v620 = vrcp.pop %v619
    %v621 = vmul.f32 %v614, %v620
    %v622 = vmul.f32 %v616, %v620
    %v623 = vpack.c.bf16 %v621, %v621
    %v624 = vpack.c.bf16 %v622, %v622
    %625 = vrot.lane.b32.xlu0 %v293, 112
    %v626 = vpop.permute.xlu0 %625
    %v628 = vsel %vm391, %v623, 0
    %v631 = vsel %vm412, %v626, 0
    %633 = vmatprep.subr.bf16.mxu0 0
    %634 = vmatpush1.bf16.msra.mxu0 %v631
    %635 = vmatprep.subr.bf16.mxu0 0
    %636 = vmatpush1.bf16.msra.mxu0 0
    %637 = vmatprep.subr.bf16.mxu0 0
    %638 = vmatpush1.bf16.msra.mxu0 0
    %639 = vmatprep.subr.bf16.mxu0 0
    %640 = vmatpush1.bf16.msra.mxu0 0
    %641 = vmatprep.subr.bf16.mxu0 0
    %642 = vmatpush1.bf16.msra.mxu0 0
    %643 = vmatprep.subr.bf16.mxu0 0
    %644 = vmatpush1.bf16.msra.mxu0 0
    %645 = vmatprep.subr.bf16.mxu0 0
    %646 = vmatpush1.bf16.msra.mxu0 0
    %647 = vmatprep.subr.bf16.mxu0 0
    %648 = vmatpush1.bf16.msra.mxu0 0
    %649 = vmatprep.subr.bf16.mxu0 0
    %650 = vmatpush1.bf16.msra.mxu0 0
    %651 = vmatprep.subr.bf16.mxu0 0
    %652 = vmatpush1.bf16.msra.mxu0 0
    %653 = vmatprep.subr.bf16.mxu0 0
    %654 = vmatpush1.bf16.msra.mxu0 0
    %655 = vmatprep.subr.bf16.mxu0 0
    %656 = vmatpush1.bf16.msra.mxu0 0
    %657 = vmatprep.subr.bf16.mxu0 0
    %658 = vmatpush1.bf16.msra.mxu0 0
    %659 = vmatprep.subr.bf16.mxu0 0
    %660 = vmatpush1.bf16.msra.mxu0 0
    %661 = vmatprep.subr.bf16.mxu0 0
    %662 = vmatpush1.bf16.msra.mxu0 0
    %663 = vmatprep.subr.bf16.mxu0 0
    %664 = vmatpush1.bf16.msra.mxu0 0
    %665 = vmatprep.mubr.bf16.mxu0 0
    %666 = vmatmul.mubr.bf16.gmra.mrb[0].mxu0 %v628
    %v667 = vpop.f32.mrb[0].mxu0
    %v668 = vadd.f32 0.0, %v667
    %v669 = vpop.f32.mrb[0].mxu0
    %v670 = vpop.f32.mrb[0].mxu0
    %v671 = vpop.f32.mrb[0].mxu0
    %672 = vdwg.mxu0
    %673 = vrot.lane.b32.xlu0 %v294, 112
    %v674 = vpop.permute.xlu0 %673
    %v676 = vsel %vm391, %v624, 0
    %v679 = vsel %vm412, %v674, 0
    %681 = vmatprep.subr.bf16.mxu0 0
    %682 = vmatpush1.bf16.msra.mxu0 %v679
    %683 = vmatprep.subr.bf16.mxu0 0
    %684 = vmatpush1.bf16.msra.mxu0 0
    %685 = vmatprep.subr.bf16.mxu0 0
    %686 = vmatpush1.bf16.msra.mxu0 0
    %687 = vmatprep.subr.bf16.mxu0 0
    %688 = vmatpush1.bf16.msra.mxu0 0
    %689 = vmatprep.subr.bf16.mxu0 0
    %690 = vmatpush1.bf16.msra.mxu0 0
    %691 = vmatprep.subr.bf16.mxu0 0
    %692 = vmatpush1.bf16.msra.mxu0 0
    %693 = vmatprep.subr.bf16.mxu0 0
    %694 = vmatpush1.bf16.msra.mxu0 0
    %695 = vmatprep.subr.bf16.mxu0 0
    %696 = vmatpush1.bf16.msra.mxu0 0
    %697 = vmatprep.subr.bf16.mxu0 0
    %698 = vmatpush1.bf16.msra.mxu0 0
    %699 = vmatprep.subr.bf16.mxu0 0
    %700 = vmatpush1.bf16.msra.mxu0 0
    %701 = vmatprep.subr.bf16.mxu0 0
    %702 = vmatpush1.bf16.msra.mxu0 0
    %703 = vmatprep.subr.bf16.mxu0 0
    %704 = vmatpush1.bf16.msra.mxu0 0
    %705 = vmatprep.subr.bf16.mxu0 0
    %706 = vmatpush1.bf16.msra.mxu0 0
    %707 = vmatprep.subr.bf16.mxu0 0
    %708 = vmatpush1.bf16.msra.mxu0 0
    %709 = vmatprep.subr.bf16.mxu0 0
    %710 = vmatpush1.bf16.msra.mxu0 0
    %711 = vmatprep.subr.bf16.mxu0 0
    %712 = vmatpush1.bf16.msra.mxu0 0
    %713 = vmatprep.mubr.bf16.mxu0 0
    %714 = vmatmul.mubr.bf16.gmra.mrb[0].mxu0 %v676
    %v715 = vpop.f32.mrb[0].mxu0
    %v716 = vadd.f32 0.0, %v715
    %v717 = vpop.f32.mrb[0].mxu0
    %v718 = vpop.f32.mrb[0].mxu0
    %v719 = vpop.f32.mrb[0].mxu0
    %720 = vdwg.mxu0
    %721 = vrot.lane.b32.xlu0 %v504, 96
    %v722 = vpop.permute.xlu0 %721
    %723 = vrot.lane.b32.xlu0 %v287, 96
    %v724 = vpop.permute.xlu0 %723
    %v726 = vsel %vm298, %v722, 0
    %v729 = vsel %vm298, %v724, 0
    %731 = vmatprep.subr.bf16.mxu0 0
    %732 = vmatpush1.bf16.xpose.msra.mxu0 %v729
    %733 = vmatprep.subr.bf16.mxu0 0
    %734 = vmatpush1.bf16.xpose.msra.mxu0 0
    %735 = vmatprep.subr.bf16.mxu0 0
    %736 = vmatpush1.bf16.xpose.msra.mxu0 0
    %737 = vmatprep.subr.bf16.mxu0 0
    %738 = vmatpush1.bf16.xpose.msra.mxu0 0
    %739 = vmatprep.subr.bf16.mxu0 0
    %740 = vmatpush1.bf16.xpose.msra.mxu0 0
    %741 = vmatprep.subr.bf16.mxu0 0
    %742 = vmatpush1.bf16.xpose.msra.mxu0 0
    %743 = vmatprep.subr.bf16.mxu0 0
    %744 = vmatpush1.bf16.xpose.msra.mxu0 0
    %745 = vmatprep.subr.bf16.mxu0 0
    %746 = vmatpush1.bf16.xpose.msra.mxu0 0
    %747 = vmatprep.subr.bf16.mxu0 0
    %748 = vmatpush1.bf16.xpose.msra.mxu0 0
    %749 = vmatprep.subr.bf16.mxu0 0
    %750 = vmatpush1.bf16.xpose.msra.mxu0 0
    %751 = vmatprep.subr.bf16.mxu0 0
    %752 = vmatpush1.bf16.xpose.msra.mxu0 0
    %753 = vmatprep.subr.bf16.mxu0 0
    %754 = vmatpush1.bf16.xpose.msra.mxu0 0
    %755 = vmatprep.subr.bf16.mxu0 0
    %756 = vmatpush1.bf16.xpose.msra.mxu0 0
    %757 = vmatprep.subr.bf16.mxu0 0
    %758 = vmatpush1.bf16.xpose.msra.mxu0 0
    %759 = vmatprep.subr.bf16.mxu0 0
    %760 = vmatpush1.bf16.xpose.msra.mxu0 0
    %761 = vmatprep.subr.bf16.mxu0 0
    %762 = vmatpush1.bf16.xpose.msra.mxu0 0
    %763 = vmatprep.mubr.bf16.mxu0 0
    %764 = vmatmul.mubr.bf16.gmra.mrb[0].mxu0 %v726
    %v765 = vpop.f32.mrb[0].mxu0
    %v766 = vadd.f32 %v295, %v765
    %v767 = vpop.f32.mrb[0].mxu0
    %v768 = vpop.f32.mrb[0].mxu0
    %v769 = vpop.f32.mrb[0].mxu0
    %770 = vdwg.mxu0
    %771 = vrot.lane.b32.xlu0 %v557, 96
    %v772 = vpop.permute.xlu0 %771
    %773 = vrot.lane.b32.xlu0 %v288, 96
    %v774 = vpop.permute.xlu0 %773
    %v776 = vsel %vm298, %v772, 0
    %v779 = vsel %vm298, %v774, 0
    %781 = vmatprep.subr.bf16.mxu0 0
    %782 = vmatpush1.bf16.xpose.msra.mxu0 %v779
    %783 = vmatprep.subr.bf16.mxu0 0
    %784 = vmatpush1.bf16.xpose.msra.mxu0 0
    %785 = vmatprep.subr.bf16.mxu0 0
    %786 = vmatpush1.bf16.xpose.msra.mxu0 0
    %787 = vmatprep.subr.bf16.mxu0 0
    %788 = vmatpush1.bf16.xpose.msra.mxu0 0
    %789 = vmatprep.subr.bf16.mxu0 0
    %790 = vmatpush1.bf16.xpose.msra.mxu0 0
    %791 = vmatprep.subr.bf16.mxu0 0
    %792 = vmatpush1.bf16.xpose.msra.mxu0 0
    %793 = vmatprep.subr.bf16.mxu0 0
    %794 = vmatpush1.bf16.xpose.msra.mxu0 0
    %795 = vmatprep.subr.bf16.mxu0 0
    %796 = vmatpush1.bf16.xpose.msra.mxu0 0
    %797 = vmatprep.subr.bf16.mxu0 0
    %798 = vmatpush1.bf16.xpose.msra.mxu0 0
    %799 = vmatprep.subr.bf16.mxu0 0
    %800 = vmatpush1.bf16.xpose.msra.mxu0 0
    %801 = vmatprep.subr.bf16.mxu0 0
    %802 = vmatpush1.bf16.xpose.msra.mxu0 0
    %803 = vmatprep.subr.bf16.mxu0 0
    %804 = vmatpush1.bf16.xpose.msra.mxu0 0
    %805 = vmatprep.subr.bf16.mxu0 0
    %806 = vmatpush1.bf16.xpose.msra.mxu0 0
    %807 = vmatprep.subr.bf16.mxu0 0
    %808 = vmatpush1.bf16.xpose.msra.mxu0 0
    %809 = vmatprep.subr.bf16.mxu0 0
    %810 = vmatpush1.bf16.xpose.msra.mxu0 0
    %811 = vmatprep.subr.bf16.mxu0 0
    %812 = vmatpush1.bf16.xpose.msra.mxu0 0
    %813 = vmatprep.mubr.bf16.mxu0 0
    %814 = vmatmul.mubr.bf16.gmra.mrb[0].mxu0 %v776
    %v815 = vpop.f32.mrb[0].mxu0
    %v816 = vadd.f32 %v295, %v815
    %v817 = vpop.f32.mrb[0].mxu0
    %v818 = vpop.f32.mrb[0].mxu0
    %v819 = vpop.f32.mrb[0].mxu0
    %820 = vdwg.mxu0
    %v821 = vsel %vm391, %v766, -inf
    %v822 = vsel %vm391, %v816, -inf
    %v823 = vmax.f32 %v821, %v822
    %v824 = vsub.f32 %v766, %v823
    %v825 = vsub.f32 %v816, %v823
    %v826 = vmul.f32 %v824, 1.442695
    %v827 = vpow.pop %v826
    %v828 = vmul.f32 %v825, 1.442695
    %v829 = vpow.pop %v828
    %v830 = vsel %vm391, %v827, 0.0
    %v831 = vsel %vm391, %v829, 0.0
    %v832 = vadd.f32 %v830, %v831
    %v833 = vrcp.pop %v832
    %v834 = vmul.f32 %v827, %v833
    %v835 = vmul.f32 %v829, %v833
    %v836 = vpack.c.bf16 %v834, %v834
    %v837 = vpack.c.bf16 %v835, %v835
    %838 = vrot.lane.b32.xlu0 %v293, 96
    %v839 = vpop.permute.xlu0 %838
    %v841 = vsel %vm391, %v836, 0
    %v844 = vsel %vm412, %v839, 0
    %846 = vmatprep.subr.bf16.mxu0 0
    %847 = vmatpush1.bf16.msra.mxu0 %v844
    %848 = vmatprep.subr.bf16.mxu0 0
    %849 = vmatpush1.bf16.msra.mxu0 0
    %850 = vmatprep.subr.bf16.mxu0 0
    %851 = vmatpush1.bf16.msra.mxu0 0
    %852 = vmatprep.subr.bf16.mxu0 0
    %853 = vmatpush1.bf16.msra.mxu0 0
    %854 = vmatprep.subr.bf16.mxu0 0
    %855 = vmatpush1.bf16.msra.mxu0 0
    %856 = vmatprep.subr.bf16.mxu0 0
    %857 = vmatpush1.bf16.msra.mxu0 0
    %858 = vmatprep.subr.bf16.mxu0 0
    %859 = vmatpush1.bf16.msra.mxu0 0
    %860 = vmatprep.subr.bf16.mxu0 0
    %861 = vmatpush1.bf16.msra.mxu0 0
    %862 = vmatprep.subr.bf16.mxu0 0
    %863 = vmatpush1.bf16.msra.mxu0 0
    %864 = vmatprep.subr.bf16.mxu0 0
    %865 = vmatpush1.bf16.msra.mxu0 0
    %866 = vmatprep.subr.bf16.mxu0 0
    %867 = vmatpush1.bf16.msra.mxu0 0
    %868 = vmatprep.subr.bf16.mxu0 0
    %869 = vmatpush1.bf16.msra.mxu0 0
    %870 = vmatprep.subr.bf16.mxu0 0
    %871 = vmatpush1.bf16.msra.mxu0 0
    %872 = vmatprep.subr.bf16.mxu0 0
    %873 = vmatpush1.bf16.msra.mxu0 0
    %874 = vmatprep.subr.bf16.mxu0 0
    %875 = vmatpush1.bf16.msra.mxu0 0
    %876 = vmatprep.subr.bf16.mxu0 0
    %877 = vmatpush1.bf16.msra.mxu0 0
    %878 = vmatprep.mubr.bf16.mxu0 0
    %879 = vmatmul.mubr.bf16.gmra.mrb[0].mxu0 %v841
    %v880 = vpop.f32.mrb[0].mxu0
    %v881 = vadd.f32 0.0, %v880
    %v882 = vpop.f32.mrb[0].mxu0
    %v883 = vpop.f32.mrb[0].mxu0
    %v884 = vpop.f32.mrb[0].mxu0
    %885 = vdwg.mxu0
    %886 = vrot.lane.b32.xlu0 %v294, 96
    %v887 = vpop.permute.xlu0 %886
    %v889 = vsel %vm391, %v837, 0
    %v892 = vsel %vm412, %v887, 0
    %894 = vmatprep.subr.bf16.mxu0 0
    %895 = vmatpush1.bf16.msra.mxu0 %v892
    %896 = vmatprep.subr.bf16.mxu0 0
    %897 = vmatpush1.bf16.msra.mxu0 0
    %898 = vmatprep.subr.bf16.mxu0 0
    %899 = vmatpush1.bf16.msra.mxu0 0
    %900 = vmatprep.subr.bf16.mxu0 0
    %901 = vmatpush1.bf16.msra.mxu0 0
    %902 = vmatprep.subr.bf16.mxu0 0
    %903 = vmatpush1.bf16.msra.mxu0 0
    %904 = vmatprep.subr.bf16.mxu0 0
    %905 = vmatpush1.bf16.msra.mxu0 0
    %906 = vmatprep.subr.bf16.mxu0 0
    %907 = vmatpush1.bf16.msra.mxu0 0
    %908 = vmatprep.subr.bf16.mxu0 0
    %909 = vmatpush1.bf16.msra.mxu0 0
    %910 = vmatprep.subr.bf16.mxu0 0
    %911 = vmatpush1.bf16.msra.mxu0 0
    %912 = vmatprep.subr.bf16.mxu0 0
    %913 = vmatpush1.bf16.msra.mxu0 0
    %914 = vmatprep.subr.bf16.mxu0 0
    %915 = vmatpush1.bf16.msra.mxu0 0
    %916 = vmatprep.subr.bf16.mxu0 0
    %917 = vmatpush1.bf16.msra.mxu0 0
    %918 = vmatprep.subr.bf16.mxu0 0
    %919 = vmatpush1.bf16.msra.mxu0 0
    %920 = vmatprep.subr.bf16.mxu0 0
    %921 = vmatpush1.bf16.msra.mxu0 0
    %922 = vmatprep.subr.bf16.mxu0 0
    %923 = vmatpush1.bf16.msra.mxu0 0
    %924 = vmatprep.subr.bf16.mxu0 0
    %925 = vmatpush1.bf16.msra.mxu0 0
    %926 = vmatprep.mubr.bf16.mxu0 0
    %927 = vmatmul.mubr.bf16.gmra.mrb[0].mxu0 %v889
    %v928 = vpop.f32.mrb[0].mxu0
    %v929 = vadd.f32 0.0, %v928
    %v930 = vpop.f32.mrb[0].mxu0
    %v931 = vpop.f32.mrb[0].mxu0
    %v932 = vpop.f32.mrb[0].mxu0
    %933 = vdwg.mxu0
    %934 = vrot.lane.b32.xlu0 %v504, 80
    %v935 = vpop.permute.xlu0 %934
    %936 = vrot.lane.b32.xlu0 %v287, 80
    %v937 = vpop.permute.xlu0 %936
    %v939 = vsel %vm298, %v935, 0
    %v942 = vsel %vm298, %v937, 0
    %944 = vmatprep.subr.bf16.mxu0 0
    %945 = vmatpush1.bf16.xpose.msra.mxu0 %v942
    %946 = vmatprep.subr.bf16.mxu0 0
    %947 = vmatpush1.bf16.xpose.msra.mxu0 0
    %948 = vmatprep.subr.bf16.mxu0 0
    %949 = vmatpush1.bf16.xpose.msra.mxu0 0
    %950 = vmatprep.subr.bf16.mxu0 0
    %951 = vmatpush1.bf16.xpose.msra.mxu0 0
    %952 = vmatprep.subr.bf16.mxu0 0
    %953 = vmatpush1.bf16.xpose.msra.mxu0 0
    %954 = vmatprep.subr.bf16.mxu0 0
    %955 = vmatpush1.bf16.xpose.msra.mxu0 0
    %956 = vmatprep.subr.bf16.mxu0 0
    %957 = vmatpush1.bf16.xpose.msra.mxu0 0
    %958 = vmatprep.subr.bf16.mxu0 0
    %959 = vmatpush1.bf16.xpose.msra.mxu0 0
    %960 = vmatprep.subr.bf16.mxu0 0
    %961 = vmatpush1.bf16.xpose.msra.mxu0 0
    %962 = vmatprep.subr.bf16.mxu0 0
    %963 = vmatpush1.bf16.xpose.msra.mxu0 0
    %964 = vmatprep.subr.bf16.mxu0 0
    %965 = vmatpush1.bf16.xpose.msra.mxu0 0
    %966 = vmatprep.subr.bf16.mxu0 0
    %967 = vmatpush1.bf16.xpose.msra.mxu0 0
    %968 = vmatprep.subr.bf16.mxu0 0
    %969 = vmatpush1.bf16.xpose.msra.mxu0 0
    %970 = vmatprep.subr.bf16.mxu0 0
    %971 = vmatpush1.bf16.xpose.msra.mxu0 0
    %972 = vmatprep.subr.bf16.mxu0 0
    %973 = vmatpush1.bf16.xpose.msra.mxu0 0
    %974 = vmatprep.subr.bf16.mxu0 0
    %975 = vmatpush1.bf16.xpose.msra.mxu0 0
    %976 = vmatprep.mubr.bf16.mxu0 0
    %977 = vmatmul.mubr.bf16.gmra.mrb[0].mxu0 %v939
    %v978 = vpop.f32.mrb[0].mxu0
    %v979 = vadd.f32 %v295, %v978
    %v980 = vpop.f32.mrb[0].mxu0
    %v981 = vpop.f32.mrb[0].mxu0
    %v982 = vpop.f32.mrb[0].mxu0
    %983 = vdwg.mxu0
    %984 = vrot.lane.b32.xlu0 %v557, 80
    %v985 = vpop.permute.xlu0 %984
    %986 = vrot.lane.b32.xlu0 %v288, 80
    %v987 = vpop.permute.xlu0 %986
    %v989 = vsel %vm298, %v985, 0
    %v992 = vsel %vm298, %v987, 0
    %994 = vmatprep.subr.bf16.mxu0 0
    %995 = vmatpush1.bf16.xpose.msra.mxu0 %v992
    %996 = vmatprep.subr.bf16.mxu0 0
    %997 = vmatpush1.bf16.xpose.msra.mxu0 0
    %998 = vmatprep.subr.bf16.mxu0 0
    %999 = vmatpush1.bf16.xpose.msra.mxu0 0
    %1000 = vmatprep.subr.bf16.mxu0 0
    %1001 = vmatpush1.bf16.xpose.msra.mxu0 0
    %1002 = vmatprep.subr.bf16.mxu0 0
    %1003 = vmatpush1.bf16.xpose.msra.mxu0 0
    %1004 = vmatprep.subr.bf16.mxu0 0
    %1005 = vmatpush1.bf16.xpose.msra.mxu0 0
    %1006 = vmatprep.subr.bf16.mxu0 0
    %1007 = vmatpush1.bf16.xpose.msra.mxu0 0
    %1008 = vmatprep.subr.bf16.mxu0 0
    %1009 = vmatpush1.bf16.xpose.msra.mxu0 0
    %1010 = vmatprep.subr.bf16.mxu0 0
    %1011 = vmatpush1.bf16.xpose.msra.mxu0 0
    %1012 = vmatprep.subr.bf16.mxu0 0
    %1013 = vmatpush1.bf16.xpose.msra.mxu0 0
    %1014 = vmatprep.subr.bf16.mxu0 0
    %1015 = vmatpush1.bf16.xpose.msra.mxu0 0
    %1016 = vmatprep.subr.bf16.mxu0 0
    %1017 = vmatpush1.bf16.xpose.msra.mxu0 0
    %1018 = vmatprep.subr.bf16.mxu0 0
    %1019 = vmatpush1.bf16.xpose.msra.mxu0 0
    %1020 = vmatprep.subr.bf16.mxu0 0
    %1021 = vmatpush1.bf16.xpose.msra.mxu0 0
    %1022 = vmatprep.subr.bf16.mxu0 0
    %1023 = vmatpush1.bf16.xpose.msra.mxu0 0
    %1024 = vmatprep.subr.bf16.mxu0 0
    %1025 = vmatpush1.bf16.xpose.msra.mxu0 0
    %1026 = vmatprep.mubr.bf16.mxu0 0
    %1027 = vmatmul.mubr.bf16.gmra.mrb[0].mxu0 %v989
    %v1028 = vpop.f32.mrb[0].mxu0
    %v1029 = vadd.f32 %v295, %v1028
    %v1030 = vpop.f32.mrb[0].mxu0
    %v1031 = vpop.f32.mrb[0].mxu0
    %v1032 = vpop.f32.mrb[0].mxu0
    %1033 = vdwg.mxu0
    %v1034 = vsel %vm391, %v979, -inf
    %v1035 = vsel %vm391, %v1029, -inf
    %v1036 = vmax.f32 %v1034, %v1035
    %v1037 = vsub.f32 %v979, %v1036
    %v1038 = vsub.f32 %v1029, %v1036
    %v1039 = vmul.f32 %v1037, 1.442695
    %v1040 = vpow.pop %v1039
    %v1041 = vmul.f32 %v1038, 1.442695
    %v1042 = vpow.pop %v1041
    %v1043 = vsel %vm391, %v1040, 0.0
    %v1044 = vsel %vm391, %v1042, 0.0
    %v1045 = vadd.f32 %v1043, %v1044
    %v1046 = vrcp.pop %v1045
    %v1047 = vmul.f32 %v1040, %v1046
    %v1048 = vmul.f32 %v1042, %v1046
    %v1049 = vpack.c.bf16 %v1047, %v1047
    %v1050 = vpack.c.bf16 %v1048, %v1048
    %1051 = vrot.lane.b32.xlu0 %v293, 80
    %v1052 = vpop.permute.xlu0 %1051
    %v1054 = vsel %vm391, %v1049, 0
    %v1057 = vsel %vm412, %v1052, 0
    %1059 = vmatprep.subr.bf16.mxu0 0
    %1060 = vmatpush1.bf16.msra.mxu0 %v1057
    %1061 = vmatprep.subr.bf16.mxu0 0
    %1062 = vmatpush1.bf16.msra.mxu0 0
    %1063 = vmatprep.subr.bf16.mxu0 0
    %1064 = vmatpush1.bf16.msra.mxu0 0
    %1065 = vmatprep.subr.bf16.mxu0 0
    %1066 = vmatpush1.bf16.msra.mxu0 0
    %1067 = vmatprep.subr.bf16.mxu0 0
    %1068 = vmatpush1.bf16.msra.mxu0 0
    %1069 = vmatprep.subr.bf16.mxu0 0
    %1070 = vmatpush1.bf16.msra.mxu0 0
    %1071 = vmatprep.subr.bf16.mxu0 0
    %1072 = vmatpush1.bf16.msra.mxu0 0
    %1073 = vmatprep.subr.bf16.mxu0 0
    %1074 = vmatpush1.bf16.msra.mxu0 0
    %1075 = vmatprep.subr.bf16.mxu0 0
    %1076 = vmatpush1.bf16.msra.mxu0 0
    %1077 = vmatprep.subr.bf16.mxu0 0
    %1078 = vmatpush1.bf16.msra.mxu0 0
    %1079 = vmatprep.subr.bf16.mxu0 0
    %1080 = vmatpush1.bf16.msra.mxu0 0
    %1081 = vmatprep.subr.bf16.mxu0 0
    %1082 = vmatpush1.bf16.msra.mxu0 0
    %1083 = vmatprep.subr.bf16.mxu0 0
    %1084 = vmatpush1.bf16.msra.mxu0 0
    %1085 = vmatprep.subr.bf16.mxu0 0
    %1086 = vmatpush1.bf16.msra.mxu0 0
    %1087 = vmatprep.subr.bf16.mxu0 0
    %1088 = vmatpush1.bf16.msra.mxu0 0
    %1089 = vmatprep.subr.bf16.mxu0 0
    %1090 = vmatpush1.bf16.msra.mxu0 0
    %1091 = vmatprep.mubr.bf16.mxu0 0
    %1092 = vmatmul.mubr.bf16.gmra.mrb[0].mxu0 %v1054
    %v1093 = vpop.f32.mrb[0].mxu0
    %v1094 = vadd.f32 0.0, %v1093
    %v1095 = vpop.f32.mrb[0].mxu0
    %v1096 = vpop.f32.mrb[0].mxu0
    %v1097 = vpop.f32.mrb[0].mxu0
    %1098 = vdwg.mxu0
    %1099 = vrot.lane.b32.xlu0 %v294, 80
    %v1100 = vpop.permute.xlu0 %1099
    %v1102 = vsel %vm391, %v1050, 0
    %v1105 = vsel %vm412, %v1100, 0
    %1107 = vmatprep.subr.bf16.mxu0 0
    %1108 = vmatpush1.bf16.msra.mxu0 %v1105
    %1109 = vmatprep.subr.bf16.mxu0 0
    %1110 = vmatpush1.bf16.msra.mxu0 0
    %1111 = vmatprep.subr.bf16.mxu0 0
    %1112 = vmatpush1.bf16.msra.mxu0 0
    %1113 = vmatprep.subr.bf16.mxu0 0
    %1114 = vmatpush1.bf16.msra.mxu0 0
    %1115 = vmatprep.subr.bf16.mxu0 0
    %1116 = vmatpush1.bf16.msra.mxu0 0
    %1117 = vmatprep.subr.bf16.mxu0 0
    %1118 = vmatpush1.bf16.msra.mxu0 0
    %1119 = vmatprep.subr.bf16.mxu0 0
    %1120 = vmatpush1.bf16.msra.mxu0 0
    %1121 = vmatprep.subr.bf16.mxu0 0
    %1122 = vmatpush1.bf16.msra.mxu0 0
    %1123 = vmatprep.subr.bf16.mxu0 0
    %1124 = vmatpush1.bf16.msra.mxu0 0
    %1125 = vmatprep.subr.bf16.mxu0 0
    %1126 = vmatpush1.bf16.msra.mxu0 0
    %1127 = vmatprep.subr.bf16.mxu0 0
    %1128 = vmatpush1.bf16.msra.mxu0 0
    %1129 = vmatprep.subr.bf16.mxu0 0
    %1130 = vmatpush1.bf16.msra.mxu0 0
    %1131 = vmatprep.subr.bf16.mxu0 0
    %1132 = vmatpush1.bf16.msra.mxu0 0
    %1133 = vmatprep.subr.bf16.mxu0 0
    %1134 = vmatpush1.bf16.msra.mxu0 0
    %1135 = vmatprep.subr.bf16.mxu0 0
    %1136 = vmatpush1.bf16.msra.mxu0 0
    %1137 = vmatprep.subr.bf16.mxu0 0
    %1138 = vmatpush1.bf16.msra.mxu0 0
    %1139 = vmatprep.mubr.bf16.mxu0 0
    %1140 = vmatmul.mubr.bf16.gmra.mrb[0].mxu0 %v1102
    %v1141 = vpop.f32.mrb[0].mxu0
    %v1142 = vadd.f32 0.0, %v1141
    %v1143 = vpop.f32.mrb[0].mxu0
    %v1144 = vpop.f32.mrb[0].mxu0
    %v1145 = vpop.f32.mrb[0].mxu0
    %1146 = vdwg.mxu0
    %v1147 = vld [vmem:[#allocation3] sm:$0xff]
    %v1148 = vld [vmem:[#allocation3 + $0x8] sm:$0xff]
    %1151 = vrot.lane.b32.xlu0 %v668, 16
    %v1152 = vpop.permute.xlu0 %1151
    %1153 = vrot.lane.b32.xlu0 %v716, 16
    %v1154 = vpop.permute.xlu0 %1153
    %1159 = vrot.lane.b32.xlu0 %v881, 32
    %v1160 = vpop.permute.xlu0 %1159
    %1161 = vrot.lane.b32.xlu0 %v929, 32
    %v1162 = vpop.permute.xlu0 %1161
    %1167 = vrot.lane.b32.xlu0 %v1094, 48
    %v1168 = vpop.permute.xlu0 %1167
    %1169 = vrot.lane.b32.xlu0 %v1142, 48
    %v1170 = vpop.permute.xlu0 %1169
    %v1173 = vsel %vm298, %v451, %v1152
    %v1174 = vsel %vm298, %v497, %v1154
    %v1175 = vsel %vm178, %v1173, %v1160
    %v1176 = vsel %vm178, %v1174, %v1162
    %vm1177 = vcmask 392192
    %v1178 = vsel %vm1177, %v1175, %v1168
    %v1179 = vsel %vm1177, %v1176, %v1170
    %v1180 = vadd.f32 %v1147, %v1178
    %v1181 = vadd.f32 %v1148, %v1179
    %vm1182 = vcmask 523264
    %1183 = vst.msk [vmem:[#allocation3] sm:$0xff] %vm1182, %v1180
    %1184 = vst.msk [vmem:[#allocation3 + $0x8] sm:$0xff] %vm1182, %v1181
    // Predicated region
    $region50: #{tpu_custom_call.1} parent=1 // pred_check
      %p1185 = pneg %p72
    $region51: #{tpu_custom_call.1} parent=1 // pred_check_branch
      %1187 = sbr.rel (%p1185) target = $region53
    $region52: #{tpu_custom_call.1} parent=1 // pred_region
      %v1188 = vld [vmem:[#allocation3] sm:$0xff]
      %v1189 = vld [vmem:[#allocation3 + $0x8] sm:$0xff]
      %v1190 = vpack.c.bf16 %v1188, %v1188
      %v1191 = vpack.c.bf16 %v1189, %v1189
      %v1192 = vld [vmem:[%s7] sm:$0xf]
      %v1193 = vld [vmem:[%s7 + $0x4] sm:$0xf]
      %v1194 = vld [vmem:[%s7 + $0x8] sm:$0xf]
      %v1195 = vld [vmem:[%s7 + $0xc] sm:$0xf]
      %v1196 = vld [vmem:[%s7 + $0x10] sm:$0xf]
      %v1197 = vld [vmem:[%s7 + $0x14] sm:$0xf]
      %v1198 = vld [vmem:[%s7 + $0x18] sm:$0xf]
      %v1199 = vld [vmem:[%s7 + $0x1c] sm:$0xf]
      %v1202 = vunpack.c.l.b16 %v1190
      %v1203 = vunpack.c.l.b16 %v1191
      %v1204 = vpack.c.b16 %v1203, %v1202
      %v1213 = vunpack.c.l.b16 %v1192
      %v1214 = vunpack.c.l.b16 %v1193
      %v1215 = vunpack.c.l.b16 %v1194
      %v1216 = vunpack.c.l.b16 %v1195
      %v1217 = vunpack.c.l.b16 %v1196
      %v1218 = vunpack.c.l.b16 %v1197
      %v1219 = vunpack.c.l.b16 %v1198
      %v1220 = vunpack.c.l.b16 %v1199
      %v1221 = vpack.c.b16 %v1214, %v1213
      %v1222 = vpack.c.b16 %v1216, %v1215
      %v1223 = vpack.c.b16 %v1218, %v1217
      %v1224 = vpack.c.b16 %v1220, %v1219
      %v1230 = vsel %vm1182, %v1204, 0
      %1232 = vmatprep.subr.bf16.mxu0 0
      %1233 = vmatpush1.bf16.msra.mxu0 %v1221
      %1234 = vmatprep.subr.bf16.mxu0 0
      %1235 = vmatpush1.bf16.msra.mxu0 %v1222
      %1236 = vmatprep.subr.bf16.mxu0 0
      %1237 = vmatpush1.bf16.msra.mxu0 %v1223
      %1238 = vmatprep.subr.bf16.mxu0 0
      %1239 = vmatpush1.bf16.msra.mxu0 %v1224
      %1240 = vmatprep.subr.bf16.mxu0 0
      %1241 = vmatpush1.bf16.msra.mxu0 0
      %1242 = vmatprep.subr.bf16.mxu0 0
      %1243 = vmatpush1.bf16.msra.mxu0 0
      %1244 = vmatprep.subr.bf16.mxu0 0
      %1245 = vmatpush1.bf16.msra.mxu0 0
      %1246 = vmatprep.subr.bf16.mxu0 0
      %1247 = vmatpush1.bf16.msra.mxu0 0
      %1248 = vmatprep.subr.bf16.mxu0 0
      %1249 = vmatpush1.bf16.msra.mxu0 0
      %1250 = vmatprep.subr.bf16.mxu0 0
      %1251 = vmatpush1.bf16.msra.mxu0 0
      %1252 = vmatprep.subr.bf16.mxu0 0
      %1253 = vmatpush1.bf16.msra.mxu0 0
      %1254 = vmatprep.subr.bf16.mxu0 0
      %1255 = vmatpush1.bf16.msra.mxu0 0
      %1256 = vmatprep.subr.bf16.mxu0 0
      %1257 = vmatpush1.bf16.msra.mxu0 0
      %1258 = vmatprep.subr.bf16.mxu0 0
      %1259 = vmatpush1.bf16.msra.mxu0 0
      %1260 = vmatprep.subr.bf16.mxu0 0
      %1261 = vmatpush1.bf16.msra.mxu0 0
      %1262 = vmatprep.subr.bf16.mxu0 0
      %1263 = vmatpush1.bf16.msra.mxu0 0
      %1264 = vmatprep.mubr.bf16.mxu0 0
      %1265 = vmatmul.mubr.bf16.gmra.mrb[0].mxu0 %v1230
      %v1266 = vpop.f32.mrb[0].mxu0
      %v1267 = vadd.f32 0.0, %v1266
      %v1268 = vpop.f32.mrb[0].mxu0
      %v1269 = vpop.f32.mrb[0].mxu0
      %v1270 = vadd.f32 0.0, %v1269
      %v1271 = vpop.f32.mrb[0].mxu0
      %1272 = vdwg.mxu0
      %1273 = vst.msk [vmem:[#allocation10] sm:$0xff] %vm178, %v1267
      %1274 = vst.msk [vmem:[#allocation10 + $0x8] sm:$0xff] %vm178, %v1270
    $region53: #{tpu_custom_call.1} parent=1 // pred_fallthru
      _
    // Predicated region
    $region54: #{tpu_custom_call.1} parent=1 // pred_check
      _
    $region55: #{tpu_custom_call.1} parent=1 // pred_check_branch
      %1276 = sbr.rel (0) target = $region57
    $region56: #{tpu_custom_call.1} parent=1 // pred_region
      %s1278 = ssub.s32 256, 256
      %1279 = vsyncadd [#allocation6], %s1278
      %s1280 = sshll.u32 [#allocation10], 4
      %s1281 = int_to_ptr.vmem [resolvable:$true] %s1280
      %1286 = dma.vmem_to_hbm [thread:$0]  %s1281, 256, %s8, [#allocation6], 128, 128, 8
    $region57: #{tpu_custom_call.1} parent=1 // pred_fallthru
      _
    // Predicated region
    $region58: #{tpu_custom_call.1} parent=1 // pred_check
      _
    $region59: #{tpu_custom_call.1} parent=1 // pred_check_branch
      %1288 = sbr.rel (0) target = $region61
    $region60: #{tpu_custom_call.1} parent=1 // pred_region
      %1289 = dma.done [#allocation6], 256
    $region61: #{tpu_custom_call.1} parent=1 // pred_fallthru
      _
    %1290 = vsyncpa [#allocation5], 1
    %1291 = vsyncpa [#allocation8], 1
    %1292 = vsyncpa [#allocation6], 1

</llo_original>
